<compile_context>
chip_gen: v5e
topology: v5e:2x2
jax: 0.10.0
libtpu: 0.0.40
codegen_flags: <defaults>
</compile_context>

<pallas_src>
import functools
import numpy as np
import jax
import jax.numpy as jnp
from jax import lax
from jax.experimental import pallas as pl
from jax.experimental.pallas import tpu as pltpu


# ----------------------------------------------------------------------------
# Pallas kernels
# ----------------------------------------------------------------------------
def _embedding_kernel(x_ref, sub4_ref, w1_ref, b1_ref, a_hi_ref,
                      sub2_ref, w2_ref, b2_ref, t3_ref, o_ref):
    """Fused per-image embedding (channels-last, all spatial ops as matmuls).

    x_ref   : [1, S*S, Cin]   full-resolution image, channels-last
    sub4    : [P*P, S*S]      stride-4 spatial subsample (row selection)
    w1/b1   : [Cin, F1]/[1,F1] stand-in "layer2" 1x1 conv
    a_hi    : [P*P, P*P]      AvgPool2d(3,1,1) on the P x P grid (kron form)
    sub2    : [Q*Q, P*P]      stride-2 spatial subsample
    w2/b2   : [F1, F2]/[1,F2] stand-in "layer3" 1x1 conv
    t3      : [P*P, Q*Q]      AvgPool(3,1,1) on Q grid + nearest upsample Q->P
    o_ref   : [1, P*P, F1+F2] embedding, channels-last
    """
    x = x_ref[0]                                                       # [S*S, Cin]
    x2 = jnp.dot(sub4_ref[...], x, preferred_element_type=jnp.float32)  # [P*P, Cin]
    h2 = jnp.maximum(
        jnp.dot(x2, w1_ref[...], preferred_element_type=jnp.float32) + b1_ref[...],
        0.0)                                                            # [P*P, F1]
    feat2 = jnp.dot(a_hi_ref[...], h2, preferred_element_type=jnp.float32)  # pooled
    h2s = jnp.dot(sub2_ref[...], h2, preferred_element_type=jnp.float32)    # [Q*Q, F1]
    h3 = jnp.maximum(
        jnp.dot(h2s, w2_ref[...], preferred_element_type=jnp.float32) + b2_ref[...],
        0.0)                                                            # [Q*Q, F2]
    feat3 = jnp.dot(t3_ref[...], h3, preferred_element_type=jnp.float32)    # [P*P, F2]
    o_ref[0] = jnp.concatenate([feat2, feat3], axis=1).astype(o_ref.dtype)


def compute_embedding(x_cl, params):
    """x_cl: [B, S*S, Cin] channels-last input -> [B, P*P, F] embedding."""
    B, SS, Cin = x_cl.shape
    PP = params["a_hi"].shape[0]
    QQ = params["sub2"].shape[0]
    F1 = params["w1"].shape[1]
    F2 = params["w2"].shape[1]
    F = F1 + F2
    return pl.pallas_call(
        _embedding_kernel,
        out_shape=jax.ShapeDtypeStruct((B, PP, F), jnp.float32),
        grid=(B,),
        in_specs=[
            pl.BlockSpec((1, SS, Cin), lambda b: (b, 0, 0)),
            pl.BlockSpec((PP, SS), lambda b: (0, 0)),
            pl.BlockSpec((Cin, F1), lambda b: (0, 0)),
            pl.BlockSpec((1, F1), lambda b: (0, 0)),
            pl.BlockSpec((PP, PP), lambda b: (0, 0)),
            pl.BlockSpec((QQ, PP), lambda b: (0, 0)),
            pl.BlockSpec((F1, F2), lambda b: (0, 0)),
            pl.BlockSpec((1, F2), lambda b: (0, 0)),
            pl.BlockSpec((PP, QQ), lambda b: (0, 0)),
        ],
        out_specs=pl.BlockSpec((1, PP, F), lambda b: (b, 0, 0)),
        compiler_params=pltpu.CompilerParams(dimension_semantics=("parallel",)),
    )(x_cl, params["sub4"], params["w1"], params["b1"], params["a_hi"],
      params["sub2"], params["w2"], params["b2"], params["t3"])


def _nn_min_kernel(e_ref, e2_ref, m_ref, m2_ref, o_ref):
    """torch.cdist(embedding, memory_bank).min(1) -- scores only.

    Streams the bank in M-chunks (grid axis, 'arbitrary').  The lane-dense
    output block [1, B*N] doubles as the running-min accumulator of
    (||m||^2 - 2 m.e); ||e||^2 is added and sqrt applied only on the reduced
    row in the final step (min is monotone under sqrt).
    """
    k = pl.program_id(0)

    @pl.when(k == 0)
    def _init():
        o_ref[...] = jnp.full(o_ref.shape, jnp.inf, jnp.float32)

    cross = lax.dot_general(m_ref[...], e_ref[...],
                            (((1,), (1,)), ((), ())),
                            preferred_element_type=jnp.float32)   # [TM, BN] f32
    part = m2_ref[...] - 2.0 * cross                              # [TM, BN]
    o_ref[...] = jnp.minimum(o_ref[...],
                             jnp.min(part, axis=0, keepdims=True))  # [1, BN]

    @pl.when(k == pl.num_programs(0) - 1)
    def _finalize():
        o_ref[...] = jnp.sqrt(jnp.maximum(o_ref[...] + e2_ref[...], 0.0))


def nearest_neighbor_scores(emb_flat, bank_bf16, bank_sq, *, m_chunk):
    """emb_flat: [B*N, F] f32; bank_bf16: [M, F]; bank_sq: [M, 1] -> [B*N] f32."""
    BN, F = emb_flat.shape
    M = bank_bf16.shape[0]
    assert M % m_chunk == 0, "bank size must be a multiple of the M-chunk"
    n_chunks = M // m_chunk
    # query squared norms (f32, computed once) and bf16 cross-term operand
    e2 = jnp.sum(emb_flat * emb_flat, axis=1)[None, :]            # [1, BN] f32
    e_bf = emb_flat.astype(jnp.bfloat16)
    scores = pl.pallas_call(
        _nn_min_kernel,
        out_shape=jax.ShapeDtypeStruct((1, BN), jnp.float32),
        grid=(n_chunks,),
        in_specs=[
            pl.BlockSpec((BN, F), lambda k: (0, 0)),
            pl.BlockSpec((1, BN), lambda k: (0, 0)),
            pl.BlockSpec((m_chunk, F), lambda k: (k, 0)),
            pl.BlockSpec((m_chunk, 1), lambda k: (k, 0)),
        ],
        out_specs=pl.BlockSpec((1, BN), lambda k: (0, 0)),
        compiler_params=pltpu.CompilerParams(dimension_semantics=("arbitrary",)),
    )(e_bf, e2, bank_bf16, bank_sq)
    return scores[0]


def _map_blur_kernel(p_ref, k_ref, o_ref):
    """Anomaly map: nearest upsample + Gaussian blur as one lane-dense matmul."""
    o_ref[...] = jnp.dot(p_ref[...], k_ref[...],
                         preferred_element_type=jnp.float32).astype(o_ref.dtype)


def anomaly_map_upsample_blur(patch_maps_flat, k_map):
    """patch_maps_flat: [B, P*P]; k_map: [P*P, S*S] -> [B, S*S]."""
    B, PP = patch_maps_flat.shape
    SS = k_map.shape[1]
    return pl.pallas_call(
        _map_blur_kernel,
        out_shape=jax.ShapeDtypeStruct((B, SS), jnp.float32),
        grid=(1,),
        in_specs=[pl.BlockSpec((B, PP), lambda i: (0, 0)),
                  pl.BlockSpec((PP, SS), lambda i: (0, 0))],
        out_specs=pl.BlockSpec((B, SS), lambda i: (0, 0)),
        compiler_params=pltpu.CompilerParams(dimension_semantics=("arbitrary",)),
    )(patch_maps_flat, k_map)


# ----------------------------------------------------------------------------
# Static matrix setup (numpy glue; all fixed at init time)
# ----------------------------------------------------------------------------
def avgpool3x3_matrix(n):
    """AvgPool2d(3, 1, 1), count_include_pad=True, 1-D separable factor."""
    p = np.zeros((n, n), np.float32)
    for i in range(n):
        for j in (i - 1, i, i + 1):
            if 0 <= j < n:
                p[i, j] = 1.0 / 3.0
    return p


def nearest_upsample_matrix(out_size, in_size):
    """F.interpolate(mode='nearest') along one axis as a matrix."""
    u = np.zeros((out_size, in_size), np.float32)
    for i in range(out_size):
        u[i, min(int(i * in_size / out_size), in_size - 1)] = 1.0
    return u


def gaussian_blur_matrix(size, sigma):
    """GaussianBlur2d (kernel=2*int(4*sigma+.5)+1, reflect pad), 1-D factor."""
    k = 2 * int(4.0 * sigma + 0.5) + 1
    half = k // 2
    xs = np.arange(k, dtype=np.float64) - half
    g = np.exp(-(xs ** 2) / (2.0 * sigma ** 2))
    g = (g / g.sum()).astype(np.float32)
    padded = size + 2 * half
    refl = np.zeros((padded, size), np.float32)
    for t in range(-half, size + half):
        src = t
        if src < 0:
            src = -src
        elif src >= size:
            src = 2 * (size - 1) - src
        refl[t + half, src] = 1.0
    conv = np.zeros((size, padded), np.float32)
    for o in range(size):
        conv[o, o:o + k] = g
    return conv @ refl


def subsample_matrix(in_size, out_size):
    """Row-selection matrix for plane[::stride, ::stride] on row-major flatten."""
    stride = in_size // out_size
    m = np.zeros((out_size * out_size, in_size * in_size), np.float32)
    for i in range(out_size):
        for j in range(out_size):
            m[i * out_size + j, (i * stride) * in_size + j * stride] = 1.0
    return m


def init_params(key, *, c_in, f1, f2, grid_hi, grid_lo, input_size, bank_size,
                sigma=4.0):
    k1, k2, k3, k4, k5 = jax.random.split(key, 5)
    feat_dim = f1 + f2
    s = input_size[0]
    p, q = grid_hi, grid_lo

    pool_p = avgpool3x3_matrix(p)                   # [p, p]
    pool_q = avgpool3x3_matrix(q)                   # [q, q]
    up_qp = nearest_upsample_matrix(p, q)           # [p, q]
    lc = up_qp @ pool_q                             # pool then upsample, [p, q]
    l_map = gaussian_blur_matrix(s, sigma) @ nearest_upsample_matrix(s, p)  # [s, p]

    # synthetic deterministic memory bank (coreset stand-in)
    bank = jax.random.uniform(k5, (bank_size, feat_dim), jnp.float32, 0.0, 2.0)

    return {
        # stand-in backbone 1x1 convs
        "w1": jax.random.normal(k1, (c_in, f1), jnp.float32) * 0.3,
        "b1": jax.random.normal(k2, (1, f1), jnp.float32) * 0.1,
        "w2": jax.random.normal(k3, (f1, f2), jnp.float32) * 0.3,
        "b2": jax.random.normal(k4, (1, f2), jnp.float32) * 0.1,
        # spatial operators, Kron-flattened for channels-last matmuls
        "sub4": jnp.asarray(subsample_matrix(s, p)),          # [p*p, s*s]
        "sub2": jnp.asarray(subsample_matrix(p, q)),          # [q*q, p*p]
        "a_hi": jnp.asarray(np.kron(pool_p, pool_p)),         # [p*p, p*p]
        "t3": jnp.asarray(np.kron(lc, lc)),                   # [p*p, q*q]
        "k_map": jnp.asarray(np.kron(l_map, l_map).T),        # [p*p, s*s]
        # memory bank (bf16 for the cross-term matmul) + precomputed ||m||^2
        "bank_bf16": bank.astype(jnp.bfloat16),
        "bank_sq": jnp.sum(bank * bank, axis=1, keepdims=True),  # [M, 1] f32
    }


# ----------------------------------------------------------------------------
# Forward pass (eval / inference branch of PatchcoreModel.forward)
# ----------------------------------------------------------------------------
def patchcore_forward(x, params, *, m_chunk=64):
    B, Cin, S, _ = x.shape
    # single NCHW -> channels-last transpose at the input
    x_cl = jnp.transpose(x, (0, 2, 3, 1)).reshape(B, S * S, Cin)
    # get_embedding (backbone stand-in + AvgPool(3,1,1) + nearest interp + concat)
    emb = compute_embedding(x_cl, params)                      # [B, P*P, F]
    _, PP, F = emb.shape
    P = int(round(PP ** 0.5))
    # reshape_embedding -> [B*P*P, F]
    emb_flat = emb.reshape(B * PP, F)
    # nearest_neighbors(n_neighbors=1): cdist + min over the memory bank
    patch_scores = nearest_neighbor_scores(
        emb_flat, params["bank_bf16"], params["bank_sq"], m_chunk=m_chunk)
    patch_scores = patch_scores.reshape(B, PP)
    # compute_anomaly_score (num_neighbors == 1): patch_scores.amax(1)
    anomaly_score = jnp.max(patch_scores, axis=1)              # [B]
    # AnomalyMapGenerator: nearest upsample to input_size + Gaussian blur
    anomaly_map = anomaly_map_upsample_blur(patch_scores, params["k_map"])
    anomaly_map = anomaly_map.reshape(B, 1, S, S)
    return anomaly_map, anomaly_score


# ----------------------------------------------------------------------------
if __name__ == "__main__":
    B, C_IN, S = 2, 4, 32          # input images [B, C, S, S]; input_size=(S, S)
    F1, F2 = 64, 64                # stand-in backbone widths (F = 128, lane-aligned)
    P_HI, P_LO = 8, 4              # patch-grid sizes of the two feature layers
    BANK = 128                     # coreset / memory-bank size
    M_CHUNK = 64                   # bank rows streamed per grid step

    key = jax.random.PRNGKey(0)
    kx, kp = jax.random.split(key)
    x = jax.random.normal(kx, (B, C_IN, S, S), jnp.float32)

    params = init_params(kp, c_in=C_IN, f1=F1, f2=F2, grid_hi=P_HI,
                         grid_lo=P_LO, input_size=(S, S), bank_size=BANK)

    fwd = jax.jit(functools.partial(patchcore_forward, m_chunk=M_CHUNK))
    anomaly_map, anomaly_score = fwd(x, params)
    jax.block_until_ready((anomaly_map, anomaly_score))

    assert anomaly_map.shape == (B, 1, S, S)
    assert anomaly_score.shape == (B,)
    assert bool(jnp.all(jnp.isfinite(anomaly_map)))
    assert bool(jnp.all(jnp.isfinite(anomaly_score)))
    print("KERNEL_OK")
</pallas_src>

<mosaic_0001>
module attributes {stable_mosaic.version = 11 : i64} {
  func.func @_embedding_kernel(%arg0: i32, %arg1: memref<1x1024x4xf32, #tpu.memory_space<vmem>>, %arg2: memref<64x1024xf32, #tpu.memory_space<vmem>>, %arg3: memref<4x64xf32, #tpu.memory_space<vmem>>, %arg4: memref<1x64xf32, #tpu.memory_space<vmem>>, %arg5: memref<64x64xf32, #tpu.memory_space<vmem>>, %arg6: memref<16x64xf32, #tpu.memory_space<vmem>>, %arg7: memref<64x64xf32, #tpu.memory_space<vmem>>, %arg8: memref<1x64xf32, #tpu.memory_space<vmem>>, %arg9: memref<64x16xf32, #tpu.memory_space<vmem>>, %arg10: memref<1x64x128xf32, #tpu.memory_space<vmem>>) attributes {dimension_semantics = [#tpu.dimension_semantics<parallel>], iteration_bounds = array<i64: 2>, scalar_prefetch = 0 : i64, scratch_operands = 0 : i64, tpu.core_type = #tpu.core_type<tc>, window_params = [{transform_indices = @transform_0, window_bounds = array<i64: 1, 1024, 4>}, {pipeline_mode = #tpu.pipeline_mode<synchronous>, transform_indices = @transform_1, window_bounds = array<i64: 64, 1024>}, {pipeline_mode = #tpu.pipeline_mode<synchronous>, transform_indices = @transform_2, window_bounds = array<i64: 4, 64>}, {pipeline_mode = #tpu.pipeline_mode<synchronous>, transform_indices = @transform_3, window_bounds = array<i64: 1, 64>}, {pipeline_mode = #tpu.pipeline_mode<synchronous>, transform_indices = @transform_4, window_bounds = array<i64: 64, 64>}, {pipeline_mode = #tpu.pipeline_mode<synchronous>, transform_indices = @transform_5, window_bounds = array<i64: 16, 64>}, {pipeline_mode = #tpu.pipeline_mode<synchronous>, transform_indices = @transform_6, window_bounds = array<i64: 64, 64>}, {pipeline_mode = #tpu.pipeline_mode<synchronous>, transform_indices = @transform_7, window_bounds = array<i64: 1, 64>}, {pipeline_mode = #tpu.pipeline_mode<synchronous>, transform_indices = @transform_8, window_bounds = array<i64: 64, 16>}, {transform_indices = @transform_9, window_bounds = array<i64: 1, 64, 128>}]} {
    %c0 = arith.constant 0 : index
    %c0_0 = arith.constant 0 : index
    %c0_1 = arith.constant 0 : index
    %0 = vector.load %arg1[%c0, %c0_0, %c0_1] : memref<1x1024x4xf32, #tpu.memory_space<vmem>>, vector<1x1024x4xf32>
    %1 = vector.shape_cast %0 : vector<1x1024x4xf32> to vector<1024x4xf32>
    %c0_2 = arith.constant 0 : index
    %c0_3 = arith.constant 0 : index
    %2 = vector.load %arg2[%c0_2, %c0_3] : memref<64x1024xf32, #tpu.memory_space<vmem>>, vector<64x1024xf32>
    %cst = arith.constant dense<0.000000e+00> : vector<64x4xf32>
    %3 = tpu.matmul %2, %1, %cst {dimension_numbers = #tpu.dot_dimension_numbers<[1], [0], [0], [1], [0, 0, 1, 1], [], []>} : vector<64x1024xf32>, vector<1024x4xf32>, vector<64x4xf32> -> vector<64x4xf32>
    %c0_4 = arith.constant 0 : index
    %c0_5 = arith.constant 0 : index
    %4 = vector.load %arg3[%c0_4, %c0_5] : memref<4x64xf32, #tpu.memory_space<vmem>>, vector<4x64xf32>
    %cst_6 = arith.constant dense<0.000000e+00> : vector<64x64xf32>
    %5 = tpu.matmul %3, %4, %cst_6 {dimension_numbers = #tpu.dot_dimension_numbers<[1], [0], [0], [1], [0, 0, 1, 1], [], []>} : vector<64x4xf32>, vector<4x64xf32>, vector<64x64xf32> -> vector<64x64xf32>
    %c0_7 = arith.constant 0 : index
    %c0_8 = arith.constant 0 : index
    %6 = vector.load %arg4[%c0_7, %c0_8] : memref<1x64xf32, #tpu.memory_space<vmem>>, vector<1x64xf32>
    %7 = vector.broadcast %6 : vector<1x64xf32> to vector<64x64xf32>
    %8 = arith.addf %5, %7 : vector<64x64xf32>
    %cst_9 = arith.constant 0.000000e+00 : f32
    %9 = vector.broadcast %cst_9 : f32 to vector<64x64xf32>
    %10 = arith.maximumf %8, %9 : vector<64x64xf32>
    %c0_10 = arith.constant 0 : index
    %c0_11 = arith.constant 0 : index
    %11 = vector.load %arg5[%c0_10, %c0_11] : memref<64x64xf32, #tpu.memory_space<vmem>>, vector<64x64xf32>
    %cst_12 = arith.constant dense<0.000000e+00> : vector<64x64xf32>
    %12 = tpu.matmul %11, %10, %cst_12 {dimension_numbers = #tpu.dot_dimension_numbers<[1], [0], [0], [1], [0, 0, 1, 1], [], []>} : vector<64x64xf32>, vector<64x64xf32>, vector<64x64xf32> -> vector<64x64xf32>
    %c0_13 = arith.constant 0 : index
    %c0_14 = arith.constant 0 : index
    %13 = vector.load %arg6[%c0_13, %c0_14] : memref<16x64xf32, #tpu.memory_space<vmem>>, vector<16x64xf32>
    %cst_15 = arith.constant dense<0.000000e+00> : vector<16x64xf32>
    %14 = tpu.matmul %13, %10, %cst_15 {dimension_numbers = #tpu.dot_dimension_numbers<[1], [0], [0], [1], [0, 0, 1, 1], [], []>} : vector<16x64xf32>, vector<64x64xf32>, vector<16x64xf32> -> vector<16x64xf32>
    %c0_16 = arith.constant 0 : index
    %c0_17 = arith.constant 0 : index
    %15 = vector.load %arg7[%c0_16, %c0_17] : memref<64x64xf32, #tpu.memory_space<vmem>>, vector<64x64xf32>
    %cst_18 = arith.constant dense<0.000000e+00> : vector<16x64xf32>
    %16 = tpu.matmul %14, %15, %cst_18 {dimension_numbers = #tpu.dot_dimension_numbers<[1], [0], [0], [1], [0, 0, 1, 1], [], []>} : vector<16x64xf32>, vector<64x64xf32>, vector<16x64xf32> -> vector<16x64xf32>
    %c0_19 = arith.constant 0 : index
    %c0_20 = arith.constant 0 : index
    %17 = vector.load %arg8[%c0_19, %c0_20] : memref<1x64xf32, #tpu.memory_space<vmem>>, vector<1x64xf32>
    %18 = vector.broadcast %17 : vector<1x64xf32> to vector<16x64xf32>
    %19 = arith.addf %16, %18 : vector<16x64xf32>
    %cst_21 = arith.constant 0.000000e+00 : f32
    %20 = vector.broadcast %cst_21 : f32 to vector<16x64xf32>
    %21 = arith.maximumf %19, %20 : vector<16x64xf32>
    %c0_22 = arith.constant 0 : index
    %c0_23 = arith.constant 0 : index
    %22 = vector.load %arg9[%c0_22, %c0_23] : memref<64x16xf32, #tpu.memory_space<vmem>>, vector<64x16xf32>
    %cst_24 = arith.constant dense<0.000000e+00> : vector<64x64xf32>
    %23 = tpu.matmul %22, %21, %cst_24 {dimension_numbers = #tpu.dot_dimension_numbers<[1], [0], [0], [1], [0, 0, 1, 1], [], []>} : vector<64x16xf32>, vector<16x64xf32>, vector<64x64xf32> -> vector<64x64xf32>
    %24 = tpu.concatenate %12, %23 in 1 : vector<64x64xf32>, vector<64x64xf32> -> vector<64x128xf32>
    %c0_25 = arith.constant 0 : index
    %c0_26 = arith.constant 0 : index
    %c0_27 = arith.constant 0 : index
    %25 = vector.load %arg10[%c0_25, %c0_26, %c0_27] : memref<1x64x128xf32, #tpu.memory_space<vmem>>, vector<1x64x128xf32>
    %26 = vector.shape_cast %25 : vector<1x64x128xf32> to vector<64x128xf32>
    %27 = vector.shape_cast %24 : vector<64x128xf32> to vector<1x64x128xf32>
    tpu.vector_store %arg10[%c0_25, %c0_26, %c0_27], %27 {strides = array<i32>} : memref<1x64x128xf32, #tpu.memory_space<vmem>>, vector<1x64x128xf32>,
    return
  }
  func.func @transform_0(%arg0: i32) -> (i32, i32, i32) {
    %c0_i32 = arith.constant 0 : i32
    %c0_i32_0 = arith.constant 0 : i32
    %c0_i32_1 = arith.constant 0 : i32
    return %arg0, %c0_i32, %c0_i32_0 : i32, i32, i32
  }
  func.func @transform_1(%arg0: i32) -> (i32, i32) {
    %c0_i32 = arith.constant 0 : i32
    %c0_i32_0 = arith.constant 0 : i32
    %c0_i32_1 = arith.constant 0 : i32
    return %c0_i32, %c0_i32_0 : i32, i32
  }
  func.func @transform_2(%arg0: i32) -> (i32, i32) {
    %c0_i32 = arith.constant 0 : i32
    %c0_i32_0 = arith.constant 0 : i32
    %c0_i32_1 = arith.constant 0 : i32
    return %c0_i32, %c0_i32_0 : i32, i32
  }
  func.func @transform_3(%arg0: i32) -> (i32, i32) {
    %c0_i32 = arith.constant 0 : i32
    %c0_i32_0 = arith.constant 0 : i32
    %c0_i32_1 = arith.constant 0 : i32
    return %c0_i32, %c0_i32_0 : i32, i32
  }
  func.func @transform_4(%arg0: i32) -> (i32, i32) {
    %c0_i32 = arith.constant 0 : i32
    %c0_i32_0 = arith.constant 0 : i32
    %c0_i32_1 = arith.constant 0 : i32
    return %c0_i32, %c0_i32_0 : i32, i32
  }
  func.func @transform_5(%arg0: i32) -> (i32, i32) {
    %c0_i32 = arith.constant 0 : i32
    %c0_i32_0 = arith.constant 0 : i32
    %c0_i32_1 = arith.constant 0 : i32
    return %c0_i32, %c0_i32_0 : i32, i32
  }
  func.func @transform_6(%arg0: i32) -> (i32, i32) {
    %c0_i32 = arith.constant 0 : i32
    %c0_i32_0 = arith.constant 0 : i32
    %c0_i32_1 = arith.constant 0 : i32
    return %c0_i32, %c0_i32_0 : i32, i32
  }
  func.func @transform_7(%arg0: i32) -> (i32, i32) {
    %c0_i32 = arith.constant 0 : i32
    %c0_i32_0 = arith.constant 0 : i32
    %c0_i32_1 = arith.constant 0 : i32
    return %c0_i32, %c0_i32_0 : i32, i32
  }
  func.func @transform_8(%arg0: i32) -> (i32, i32) {
    %c0_i32 = arith.constant 0 : i32
    %c0_i32_0 = arith.constant 0 : i32
    %c0_i32_1 = arith.constant 0 : i32
    return %c0_i32, %c0_i32_0 : i32, i32
  }
  func.func @transform_9(%arg0: i32) -> (i32, i32, i32) {
    %c0_i32 = arith.constant 0 : i32
    %c0_i32_0 = arith.constant 0 : i32
    %c0_i32_1 = arith.constant 0 : i32
    return %arg0, %c0_i32, %c0_i32_0 : i32, i32, i32
  }
}

module attributes {stable_mosaic.version = 11 : i64} {
  func.func @_nn_min_kernel(%arg0: i32, %arg1: memref<128x128xbf16, #tpu.memory_space<vmem>>, %arg2: memref<1x128xf32, #tpu.memory_space<vmem>>, %arg3: memref<64x128xbf16, #tpu.memory_space<vmem>>, %arg4: memref<64x1xf32, #tpu.memory_space<vmem>>, %arg5: memref<1x128xf32, #tpu.memory_space<vmem>>) attributes {dimension_semantics = [#tpu.dimension_semantics<arbitrary>], iteration_bounds = array<i64: 2>, scalar_prefetch = 0 : i64, scratch_operands = 0 : i64, tpu.core_type = #tpu.core_type<tc>, window_params = [{pipeline_mode = #tpu.pipeline_mode<synchronous>, transform_indices = @transform_0, window_bounds = array<i64: 128, 128>}, {pipeline_mode = #tpu.pipeline_mode<synchronous>, transform_indices = @transform_1, window_bounds = array<i64: 1, 128>}, {transform_indices = @transform_2, window_bounds = array<i64: 64, 128>}, {transform_indices = @transform_3, window_bounds = array<i64: 64, 1>}, {pipeline_mode = #tpu.pipeline_mode<synchronous>, transform_indices = @transform_4, window_bounds = array<i64: 1, 128>}]} {
    %c0_i32 = arith.constant 0 : i32
    %0 = arith.cmpi eq, %arg0, %c0_i32 : i32
    %1 = arith.extui %0 : i1 to i32
    %c0_i32_0 = arith.constant 0 : i32
    %2 = arith.cmpi ne, %1, %c0_i32_0 : i32
    scf.if %2 {
      %cst_13 = arith.constant 0x7F800000 : f32
      %19 = vector.broadcast %cst_13 : f32 to vector<1x128xf32>
      %c0_14 = arith.constant 0 : index
      %c0_15 = arith.constant 0 : index
      %20 = vector.load %arg5[%c0_14, %c0_15] : memref<1x128xf32, #tpu.memory_space<vmem>>, vector<1x128xf32>
      tpu.vector_store %arg5[%c0_14, %c0_15], %19 {strides = array<i32>} : memref<1x128xf32, #tpu.memory_space<vmem>>, vector<1x128xf32>,
    } else {
    }
    %c0 = arith.constant 0 : index
    %c0_1 = arith.constant 0 : index
    %3 = vector.load %arg3[%c0, %c0_1] : memref<64x128xbf16, #tpu.memory_space<vmem>>, vector<64x128xbf16>
    %c0_2 = arith.constant 0 : index
    %c0_3 = arith.constant 0 : index
    %4 = vector.load %arg1[%c0_2, %c0_3] : memref<128x128xbf16, #tpu.memory_space<vmem>>, vector<128x128xbf16>
    %cst = arith.constant dense<0.000000e+00> : vector<64x128xf32>
    %5 = tpu.matmul %3, %4, %cst {dimension_numbers = #tpu.dot_dimension_numbers<[1], [1], [0], [0], [0, 0, 1, 0], [], []>} : vector<64x128xbf16>, vector<128x128xbf16>, vector<64x128xf32> -> vector<64x128xf32>
    %c0_4 = arith.constant 0 : index
    %c0_5 = arith.constant 0 : index
    %6 = vector.load %arg4[%c0_4, %c0_5] : memref<64x1xf32, #tpu.memory_space<vmem>>, vector<64x1xf32>
    %cst_6 = arith.constant 2.000000e+00 : f32
    %7 = vector.broadcast %cst_6 : f32 to vector<64x128xf32>
    %8 = arith.mulf %7, %5 : vector<64x128xf32>
    %9 = vector.broadcast %6 : vector<64x1xf32> to vector<64x128xf32>
    %10 = arith.subf %9, %8 : vector<64x128xf32>
    %c0_7 = arith.constant 0 : index
    %c0_8 = arith.constant 0 : index
    %11 = vector.load %arg5[%c0_7, %c0_8] : memref<1x128xf32, #tpu.memory_space<vmem>>, vector<1x128xf32>
    %cst_9 = arith.constant dense<0x7F800000> : vector<128xf32>
    %12 = vector.multi_reduction <minimumf>, %10, %cst_9 [0] : vector<64x128xf32> to vector<128xf32>
    %13 = vector.shape_cast %12 : vector<128xf32> to vector<1x128xf32>
    %14 = arith.minimumf %11, %13 : vector<1x128xf32>
    %c0_10 = arith.constant 0 : index
    %c0_11 = arith.constant 0 : index
    %15 = vector.load %arg5[%c0_10, %c0_11] : memref<1x128xf32, #tpu.memory_space<vmem>>, vector<1x128xf32>
    tpu.vector_store %arg5[%c0_10, %c0_11], %14 {strides = array<i32>} : memref<1x128xf32, #tpu.memory_space<vmem>>, vector<1x128xf32>,
    %c1_i32 = arith.constant 1 : i32
    %16 = arith.cmpi eq, %arg0, %c1_i32 : i32
    %17 = arith.extui %16 : i1 to i32
    %c0_i32_12 = arith.constant 0 : i32
    %18 = arith.cmpi ne, %17, %c0_i32_12 : i32
    scf.if %18 {
      %c0_13 = arith.constant 0 : index
      %c0_14 = arith.constant 0 : index
      %19 = vector.load %arg5[%c0_13, %c0_14] : memref<1x128xf32, #tpu.memory_space<vmem>>, vector<1x128xf32>
      %c0_15 = arith.constant 0 : index
      %c0_16 = arith.constant 0 : index
      %20 = vector.load %arg2[%c0_15, %c0_16] : memref<1x128xf32, #tpu.memory_space<vmem>>, vector<1x128xf32>
      %21 = arith.addf %19, %20 : vector<1x128xf32>
      %cst_17 = arith.constant 0.000000e+00 : f32
      %22 = vector.broadcast %cst_17 : f32 to vector<1x128xf32>
      %23 = arith.maximumf %21, %22 : vector<1x128xf32>
      %24 = math.sqrt %23 : vector<1x128xf32>
      %c0_18 = arith.constant 0 : index
      %c0_19 = arith.constant 0 : index
      %25 = vector.load %arg5[%c0_18, %c0_19] : memref<1x128xf32, #tpu.memory_space<vmem>>, vector<1x128xf32>
      tpu.vector_store %arg5[%c0_18, %c0_19], %24 {strides = array<i32>} : memref<1x128xf32, #tpu.memory_space<vmem>>, vector<1x128xf32>,
    } else {
    }
    return
  }
  func.func @transform_0(%arg0: i32) -> (i32, i32) {
    %c0_i32 = arith.constant 0 : i32
    %c0_i32_0 = arith.constant 0 : i32
    %c0_i32_1 = arith.constant 0 : i32
    return %c0_i32, %c0_i32_0 : i32, i32
  }
  func.func @transform_1(%arg0: i32) -> (i32, i32) {
    %c0_i32 = arith.constant 0 : i32
    %c0_i32_0 = arith.constant 0 : i32
    %c0_i32_1 = arith.constant 0 : i32
    return %c0_i32, %c0_i32_0 : i32, i32
  }
  func.func @transform_2(%arg0: i32) -> (i32, i32) {
    %c0_i32 = arith.constant 0 : i32
    %c0_i32_0 = arith.constant 0 : i32
    return %arg0, %c0_i32 : i32, i32
  }
  func.func @transform_3(%arg0: i32) -> (i32, i32) {
    %c0_i32 = arith.constant 0 : i32
    %c0_i32_0 = arith.constant 0 : i32
    return %arg0, %c0_i32 : i32, i32
  }
  func.func @transform_4(%arg0: i32) -> (i32, i32) {
    %c0_i32 = arith.constant 0 : i32
    %c0_i32_0 = arith.constant 0 : i32
    %c0_i32_1 = arith.constant 0 : i32
    return %c0_i32, %c0_i32_0 : i32, i32
  }
}

module attributes {stable_mosaic.version = 11 : i64} {
  func.func @_map_blur_kernel(%arg0: i32, %arg1: memref<2x64xf32, #tpu.memory_space<vmem>>, %arg2: memref<64x1024xf32, #tpu.memory_space<vmem>>, %arg3: memref<2x1024xf32, #tpu.memory_space<vmem>>) attributes {dimension_semantics = [#tpu.dimension_semantics<arbitrary>], iteration_bounds = array<i64: 1>, scalar_prefetch = 0 : i64, scratch_operands = 0 : i64, tpu.core_type = #tpu.core_type<tc>, window_params = [{pipeline_mode = #tpu.pipeline_mode<synchronous>, transform_indices = @transform_0, window_bounds = array<i64: 2, 64>}, {pipeline_mode = #tpu.pipeline_mode<synchronous>, transform_indices = @transform_1, window_bounds = array<i64: 64, 1024>}, {pipeline_mode = #tpu.pipeline_mode<synchronous>, transform_indices = @transform_2, window_bounds = array<i64: 2, 1024>}]} {
    %c0 = arith.constant 0 : index
    %c0_0 = arith.constant 0 : index
    %0 = vector.load %arg1[%c0, %c0_0] : memref<2x64xf32, #tpu.memory_space<vmem>>, vector<2x64xf32>
    %c0_1 = arith.constant 0 : index
    %c0_2 = arith.constant 0 : index
    %1 = vector.load %arg2[%c0_1, %c0_2] : memref<64x1024xf32, #tpu.memory_space<vmem>>, vector<64x1024xf32>
    %cst = arith.constant dense<0.000000e+00> : vector<2x1024xf32>
    %2 = tpu.matmul %0, %1, %cst {dimension_numbers = #tpu.dot_dimension_numbers<[1], [0], [0], [1], [0, 0, 1, 1], [], []>} : vector<2x64xf32>, vector<64x1024xf32>, vector<2x1024xf32> -> vector<2x1024xf32>
    %c0_3 = arith.constant 0 : index
    %c0_4 = arith.constant 0 : index
    %3 = vector.load %arg3[%c0_3, %c0_4] : memref<2x1024xf32, #tpu.memory_space<vmem>>, vector<2x1024xf32>
    tpu.vector_store %arg3[%c0_3, %c0_4], %2 {strides = array<i32>} : memref<2x1024xf32, #tpu.memory_space<vmem>>, vector<2x1024xf32>,
    return
  }
  func.func @transform_0(%arg0: i32) -> (i32, i32) {
    %c0_i32 = arith.constant 0 : i32
    %c0_i32_0 = arith.constant 0 : i32
    %c0_i32_1 = arith.constant 0 : i32
    return %c0_i32, %c0_i32_0 : i32, i32
  }
  func.func @transform_1(%arg0: i32) -> (i32, i32) {
    %c0_i32 = arith.constant 0 : i32
    %c0_i32_0 = arith.constant 0 : i32
    %c0_i32_1 = arith.constant 0 : i32
    return %c0_i32, %c0_i32_0 : i32, i32
  }
  func.func @transform_2(%arg0: i32) -> (i32, i32) {
    %c0_i32 = arith.constant 0 : i32
    %c0_i32_0 = arith.constant 0 : i32
    %c0_i32_1 = arith.constant 0 : i32
    return %c0_i32, %c0_i32_0 : i32, i32
  }
}

</mosaic_0001>

<llo_original>
// kernel: squeeze.1
$region0: #{squeeze.1}
  %s0 = inlined_call_operand.vmem [shape: f32[128], index: 0, kind: input, shape index: {}]
  %s1 = inlined_call_operand.vmem [shape: f32[2,64], index: 1, kind: output, shape index: {}]
  $region1: #{squeeze.1} parent=0
    #allocation0 [shape = 'u8[4096]{0}', space=vmem, size = 0x1000, scoped, tag = 'scoped mem for output reshape']
    #allocation1 [shape = 'u8[4096]{0}', space=vmem, size = 0x1000, scoped, tag = 'scoped mem for input reshape']
    %s3 = ssub.s32 2, 1
    %v4 = vld [vmem:[%s0] sm:%s3]
    %5 = vst [vmem:[#allocation1] sm:%s3] %v4
    %v6 = vld [vmem:[#allocation1] sm:$0x1]
    %vm7 = vcmask 523264
    %8 = vst.msk [vmem:[#allocation0] sm:$0x1] %vm7, %v6
    %v9 = vld [vmem:[#allocation1] sm:$0x1]
    %10 = vrot.lane.b32.xlu0 %v9, 64
    %v11 = vpop.permute.xlu0 %10
    %vm12 = vcmask 523264
    %s13 = scalar_lea.vmem [#allocation0], 1
    %14 = vst.msk [vmem:[%s13] sm:$0x1] %vm12, %v11
    %s16 = ssub.s32 4, 1
    %v17 = vld [vmem:[#allocation0] sm:%s16]
    %s19 = ssub.s32 4, 1
    %20 = vst [vmem:[%s1] sm:%s19] %v17

// kernel: patchcore_forward.4
$region0: #{patchcore_forward.4}
  #allocation0 [shape = 'u32[]', space=smem, size = 0x4, offset = 0x4, fixed_abs, tag = 'smem constant byte address 0x4 - core index']
  #allocation1 [shape = 'u32[72,128]{1,0:T(1,128)}', space=vmem, size = 0x9000, scoped, tag = 'internal scratch']
  %s0 = inlined_call_operand.vmem [shape: bf16[128,128], index: 0, kind: input, shape index: {}]
  %s1 = inlined_call_operand.vmem [shape: f32[1,128], index: 1, kind: input, shape index: {}]
  %s2 = inlined_call_operand.vmem [shape: bf16[128,128], index: 2, kind: input, shape index: {}]
  %s3 = inlined_call_operand.vmem [shape: f32[128,1], index: 3, kind: input, shape index: {}]
  %s4 = inlined_call_operand.vmem [shape: f32[1,128], index: 4, kind: output, shape index: {}]
  %s5 = sld [smem:[#allocation0]]
  $region57: #{patchcore_forward.4} parent=0
    _
  %s7 = ssub.s32 1, %s5
  %s8 = scalar_select 0, %s7, %s5
  loop: start=0, step=1, limit=4
  $region2: #{patchcore_forward.4} parent=0 // loop_pre_header
    _
  $region3: #{patchcore_forward.4} parent=0 // loop_header
    %s10 = sphi 0, %s14
    %p11 = scmp.ge.s32.totalorder %s10, 4
    %s18 = sphi 0, %s18
    %s20 = sphi 0, %s18
    %s21 = sphi 0, %s20
    %s35 = sphi 0, %s21
    %s39 = sphi 0, %s39
    %s41 = sphi 0, %s39
    %s42 = sphi 0, %s41
    %s56 = sphi 0, %s42
    %s62 = sphi 0, %s64
    %s65 = sphi 0, %s62
    %s66 = sphi 0, %s65
    %s82 = sphi 0, %s66
    %s88 = sphi 0, %s90
    %s91 = sphi 0, %s88
    %s92 = sphi 0, %s91
    %s108 = sphi 0, %s92
    %s112 = sphi 0, %s112
    %s114 = sphi 0, %s112
    %s115 = sphi 0, %s114
    %s129 = sphi 0, %s115
  $region4: #{patchcore_forward.4} parent=0 // loop_header_branch
    %13 = sbr.rel (%p11) target = $region8
  $region5: #{patchcore_forward.4} parent=0 // loop_body
    %s15 = ssub.s32 %s10, 1
    %s16 = ssub.s32 %s10, 2
    %s17 = sadd.s32 %s10, 1
    %s19 = sadd.s32 %s18, 1
    %p22 = scmp.eq.s32.totalorder %s10, 1
    %p23 = scmp.ne.s32.totalorder %s18, %s20
    %p24 = scmp.eq.s32.totalorder %s10, 0
    %p25 = por %p23, %p24
    %p26 = scmp.ne.s32.totalorder %s18, %s20
    %p27 = scmp.eq.s32.totalorder %s15, 1
    %p28 = por %p26, %p27
    %p29 = scmp.ne.s32.totalorder %s20, %s21
    %p30 = scmp.eq.s32.totalorder %s15, 0
    %p31 = por %p29, %p30
    %p32 = scmp.ne.s32.totalorder %s20, %s21
    %p33 = scmp.eq.s32.totalorder %s16, 1
    %p34 = por %p32, %p33
    %p36 = scmp.ne.s32.totalorder %s21, %s35
    %p37 = scmp.eq.s32.totalorder %s16, 0
    %p38 = por %p36, %p37
    %s40 = sadd.s32 %s39, 1
    %p43 = scmp.eq.s32.totalorder %s10, 1
    %p44 = scmp.ne.s32.totalorder %s39, %s41
    %p45 = scmp.eq.s32.totalorder %s10, 0
    %p46 = por %p44, %p45
    %p47 = scmp.ne.s32.totalorder %s39, %s41
    %p48 = scmp.eq.s32.totalorder %s15, 1
    %p49 = por %p47, %p48
    %p50 = scmp.ne.s32.totalorder %s41, %s42
    %p51 = scmp.eq.s32.totalorder %s15, 0
    %p52 = por %p50, %p51
    %p53 = scmp.ne.s32.totalorder %s41, %s42
    %p54 = scmp.eq.s32.totalorder %s16, 1
    %p55 = por %p53, %p54
    %p57 = scmp.ne.s32.totalorder %s42, %s56
    %p58 = scmp.eq.s32.totalorder %s16, 0
    %p59 = por %p57, %p58
    %s60 = ssub.s32 %s10, %s17
    %p61 = scmp.eq.s32.totalorder %s60, 0
    %s63 = sadd.s32 %s62, 1
    %s64 = scalar_select %p61, %s62, %s63
    %p67 = pneg %p61
    %p68 = scmp.eq.s32.totalorder %s10, 1
    %p69 = por %p67, %p68
    %p70 = scmp.ne.s32.totalorder %s62, %s65
    %p71 = scmp.eq.s32.totalorder %s10, 0
    %p72 = por %p70, %p71
    %p73 = scmp.ne.s32.totalorder %s62, %s65
    %p74 = scmp.eq.s32.totalorder %s15, 1
    %p75 = por %p73, %p74
    %p76 = scmp.ne.s32.totalorder %s65, %s66
    %p77 = scmp.eq.s32.totalorder %s15, 0
    %p78 = por %p76, %p77
    %p79 = scmp.ne.s32.totalorder %s65, %s66
    %p80 = scmp.eq.s32.totalorder %s16, 1
    %p81 = por %p79, %p80
    %p83 = scmp.ne.s32.totalorder %s66, %s82
    %p84 = scmp.eq.s32.totalorder %s16, 0
    %p85 = por %p83, %p84
    %s86 = ssub.s32 %s10, %s17
    %p87 = scmp.eq.s32.totalorder %s86, 0
    %s89 = sadd.s32 %s88, 1
    %s90 = scalar_select %p87, %s88, %s89
    %p93 = pneg %p87
    %p94 = scmp.eq.s32.totalorder %s10, 1
    %p95 = por %p93, %p94
    %p96 = scmp.ne.s32.totalorder %s88, %s91
    %p97 = scmp.eq.s32.totalorder %s10, 0
    %p98 = por %p96, %p97
    %p99 = scmp.ne.s32.totalorder %s88, %s91
    %p100 = scmp.eq.s32.totalorder %s15, 1
    %p101 = por %p99, %p100
    %p102 = scmp.ne.s32.totalorder %s91, %s92
    %p103 = scmp.eq.s32.totalorder %s15, 0
    %p104 = por %p102, %p103
    %p105 = scmp.ne.s32.totalorder %s91, %s92
    %p106 = scmp.eq.s32.totalorder %s16, 1
    %p107 = por %p105, %p106
    %p109 = scmp.ne.s32.totalorder %s92, %s108
    %p110 = scmp.eq.s32.totalorder %s16, 0
    %p111 = por %p109, %p110
    %s113 = sadd.s32 %s112, 1
    %p116 = scmp.eq.s32.totalorder %s10, 1
    %p117 = scmp.ne.s32.totalorder %s112, %s114
    %p118 = scmp.eq.s32.totalorder %s10, 0
    %p119 = por %p117, %p118
    %p120 = scmp.ne.s32.totalorder %s112, %s114
    %p121 = scmp.eq.s32.totalorder %s15, 1
    %p122 = por %p120, %p121
    %p123 = scmp.ne.s32.totalorder %s114, %s115
    %p124 = scmp.eq.s32.totalorder %s15, 0
    %p125 = por %p123, %p124
    %p126 = scmp.ne.s32.totalorder %s114, %s115
    %p127 = scmp.eq.s32.totalorder %s16, 1
    %p128 = por %p126, %p127
    %p130 = scmp.ne.s32.totalorder %s115, %s129
    %p131 = scmp.eq.s32.totalorder %s16, 0
    %p132 = por %p130, %p131
    %p133 = scmp.le.s32.totalorder 1, %s10
    %p134 = scmp.lt.s32.totalorder %s10, 3
    %p135 = pnand %p133, %p134
    %p136 = pneg %p135
    // Predicated region
    $region9: #{patchcore_forward.4} parent=5 // pred_check
      _
    $region10: #{patchcore_forward.4} parent=5 // pred_check_branch
      %138 = sbr.rel (%p135) target = $region12
    $region11: #{patchcore_forward.4} parent=5 // pred_region
      %s139 = ssub.s32 %s10, 1
      // Predicated region
      $region13: #{patchcore_forward.4} parent=11 // pred_check
        %p140 = pneg %p31
      $region14: #{patchcore_forward.4} parent=11 // pred_check_branch
        %142 = sbr.rel (%p140) target = $region16
      $region15: #{patchcore_forward.4} parent=11 // pred_region
        _
      $region16: #{patchcore_forward.4} parent=11 // pred_fallthru
        _
      // Predicated region
      $region17: #{patchcore_forward.4} parent=11 // pred_check
        %p143 = pneg %p52
      $region18: #{patchcore_forward.4} parent=11 // pred_check_branch
        %145 = sbr.rel (%p143) target = $region20
      $region19: #{patchcore_forward.4} parent=11 // pred_region
        _
      $region20: #{patchcore_forward.4} parent=11 // pred_fallthru
        _
    $region12: #{patchcore_forward.4} parent=5 // pred_fallthru
      _
    %p146 = scmp.lt.s32.totalorder %s10, 2
    // Predicated region
    $region21: #{patchcore_forward.4} parent=5 // pred_check
      %p147 = pneg %p146
    $region22: #{patchcore_forward.4} parent=5 // pred_check_branch
      %149 = sbr.rel (%p147) target = $region24
    $region23: #{patchcore_forward.4} parent=5 // pred_region
      // Predicated region
      $region25: #{patchcore_forward.4} parent=23 // pred_check
        %p150 = pneg %p72
      $region26: #{patchcore_forward.4} parent=23 // pred_check_branch
        %152 = sbr.rel (%p150) target = $region28
      $region27: #{patchcore_forward.4} parent=23 // pred_region
        %s153 = smul.u32 8, %s10
        %p154 = scmp.lt.s32.totalorder %s153, 15
        %s155 = scalar_select %p154, %s153, 15
        %s156 = smul.addr %s155, 4
        %s157 = scalar_lea.vmem %s2, %s156
        %s158 = smul.u32 8, %s10
      $region28: #{patchcore_forward.4} parent=23 // pred_fallthru
        _
      // Predicated region
      $region29: #{patchcore_forward.4} parent=23 // pred_check
        %p159 = pneg %p98
      $region30: #{patchcore_forward.4} parent=23 // pred_check_branch
        %161 = sbr.rel (%p159) target = $region32
      $region31: #{patchcore_forward.4} parent=23 // pred_region
        %s162 = smul.u32 8, %s10
        %p163 = scmp.lt.s32.totalorder %s162, 15
        %s164 = scalar_select %p163, %s162, 15
        %s165 = smul.addr %s164, 8
        %s166 = scalar_lea.vmem %s3, %s165
        %s167 = smul.u32 8, %s10
      $region32: #{patchcore_forward.4} parent=23 // pred_fallthru
        _
    $region24: #{patchcore_forward.4} parent=5 // pred_fallthru
      _
    %p168 = scmp.le.s32.totalorder 1, %s10
    %p169 = scmp.lt.s32.totalorder %s10, 3
    %p170 = pnand %p168, %p169
    %p171 = pneg %p170
    // Predicated region
    $region33: #{patchcore_forward.4} parent=5 // pred_check
      _
    $region34: #{patchcore_forward.4} parent=5 // pred_check_branch
      %173 = sbr.rel (%p170) target = $region36
    $region35: #{patchcore_forward.4} parent=5 // pred_region
      %s174 = ssub.s32 %s10, 1
      %p175 = pneg %p31
      %p176 = pneg %p28
      %p177 = pneg %p52
      %p178 = pneg %p49
      %s179 = smul.u32 8, %s15
      %p180 = scmp.lt.s32.totalorder %s179, 15
      %s181 = scalar_select %p180, %s179, 15
      %s182 = smul.addr %s181, 4
      %s183 = scalar_lea.vmem %s2, %s182
      %p184 = pneg %p78
      %p185 = pneg %p75
      %s186 = smul.u32 8, %s15
      %p187 = scmp.lt.s32.totalorder %s186, 15
      %s188 = scalar_select %p187, %s186, 15
      %s189 = smul.addr %s188, 8
      %s190 = scalar_lea.vmem %s3, %s189
      %p191 = pneg %p104
      %p192 = pneg %p101
      %p193 = pneg %p125
      %p194 = pneg %p122
      %s195 = smul.u32 8, %s15
      %p196 = scmp.lt.s32.totalorder %s195, 15
      %s197 = scalar_select %p196, %s195, 15
      %s198 = smul.addr %s197, 4
      %s199 = scalar_lea.vmem %s2, %s198
      %s200 = smul.u32 8, %s15
      %s201 = smul.u32 8, %s15
      %p202 = scmp.lt.s32.totalorder %s201, 15
      %s203 = scalar_select %p202, %s201, 15
      %s204 = smul.addr %s203, 8
      %s205 = scalar_lea.vmem %s3, %s204
      %s206 = smul.u32 8, %s15
      %p207 = scmp.eq.s32.totalorder %s15, 0
      // Predicated region
      $region37: #{patchcore_forward.4} parent=35 // pred_check
        %p208 = pneg %p207
      $region38: #{patchcore_forward.4} parent=35 // pred_check_branch
        %210 = sbr.rel (%p208) target = $region40
      $region39: #{patchcore_forward.4} parent=35 // pred_region
        %211 = vst [vmem:[%s4] sm:$0x1] inf
      $region40: #{patchcore_forward.4} parent=35 // pred_fallthru
        _
      %v212 = vld [vmem:[%s199] sm:$0xf]
      %v213 = vld [vmem:[%s199 + $0x4] sm:$0xf]
      %v214 = vld [vmem:[%s199 + $0x8] sm:$0xf]
      %v215 = vld [vmem:[%s199 + $0xc] sm:$0xf]
      %v216 = vld [vmem:[%s199 + $0x10] sm:$0xf]
      %v217 = vld [vmem:[%s199 + $0x14] sm:$0xf]
      %v218 = vld [vmem:[%s199 + $0x18] sm:$0xf]
      %v219 = vld [vmem:[%s199 + $0x1c] sm:$0xf]
      %v220 = vld [vmem:[%s0] sm:$0xf]
      %v221 = vld [vmem:[%s0 + $0x4] sm:$0xf]
      %v222 = vld [vmem:[%s0 + $0x8] sm:$0xf]
      %v223 = vld [vmem:[%s0 + $0xc] sm:$0xf]
      %v224 = vld [vmem:[%s0 + $0x10] sm:$0xf]
      %v225 = vld [vmem:[%s0 + $0x14] sm:$0xf]
      %v226 = vld [vmem:[%s0 + $0x18] sm:$0xf]
      %v227 = vld [vmem:[%s0 + $0x1c] sm:$0xf]
      %v228 = vld [vmem:[%s0 + $0x20] sm:$0xf]
      %v229 = vld [vmem:[%s0 + $0x24] sm:$0xf]
      %v230 = vld [vmem:[%s0 + $0x28] sm:$0xf]
      %v231 = vld [vmem:[%s0 + $0x2c] sm:$0xf]
      %v232 = vld [vmem:[%s0 + $0x30] sm:$0xf]
      %v233 = vld [vmem:[%s0 + $0x34] sm:$0xf]
      %v234 = vld [vmem:[%s0 + $0x38] sm:$0xf]
      %v235 = vld [vmem:[%s0 + $0x3c] sm:$0xf]
      %v244 = vunpack.c.l.b16 %v212
      %v245 = vunpack.c.l.b16 %v213
      %v246 = vunpack.c.l.b16 %v214
      %v247 = vunpack.c.l.b16 %v215
      %v248 = vunpack.c.l.b16 %v216
      %v249 = vunpack.c.l.b16 %v217
      %v250 = vunpack.c.l.b16 %v218
      %v251 = vunpack.c.l.b16 %v219
      %v252 = vpack.c.b16 %v245, %v244
      %v253 = vpack.c.b16 %v247, %v246
      %v254 = vpack.c.b16 %v249, %v248
      %v255 = vpack.c.b16 %v251, %v250
      %v276 = vunpack.c.l.b16 %v220
      %v277 = vunpack.c.l.b16 %v221
      %v278 = vunpack.c.l.b16 %v222
      %v279 = vunpack.c.l.b16 %v223
      %v280 = vunpack.c.l.b16 %v224
      %v281 = vunpack.c.l.b16 %v225
      %v282 = vunpack.c.l.b16 %v226
      %v283 = vunpack.c.l.b16 %v227
      %v284 = vunpack.c.l.b16 %v228
      %v285 = vunpack.c.l.b16 %v229
      %v286 = vunpack.c.l.b16 %v230
      %v287 = vunpack.c.l.b16 %v231
      %v288 = vunpack.c.l.b16 %v232
      %v289 = vunpack.c.l.b16 %v233
      %v290 = vunpack.c.l.b16 %v234
      %v291 = vunpack.c.l.b16 %v235
      %v292 = vpack.c.b16 %v277, %v276
      %v293 = vpack.c.b16 %v279, %v278
      %v294 = vpack.c.b16 %v281, %v280
      %v295 = vpack.c.b16 %v283, %v282
      %v296 = vpack.c.b16 %v285, %v284
      %v297 = vpack.c.b16 %v287, %v286
      %v298 = vpack.c.b16 %v289, %v288
      %v299 = vpack.c.b16 %v291, %v290
      %308 = vmatpush.bf16.xpose.msra.mxu0 %v299
      %309 = vmatpush.bf16.xpose.msra.mxu0 %v298
      %310 = vmatpush.bf16.xpose.msra.mxu0 %v297
      %311 = vmatpush.bf16.xpose.msra.mxu0 %v296
      %312 = vmatpush.bf16.xpose.msra.mxu0 %v295
      %313 = vmatpush.bf16.xpose.msra.mxu0 %v294
      %314 = vmatpush.bf16.xpose.msra.mxu0 %v293
      %315 = vmatpush.bf16.xpose.msra.mxu0 %v292
      %316 = vmatmul.bf16.gmra.mxu0 %v252
      %v317 = vpop.f32.mrf.mxu0
      %v318 = vadd.f32 0.0, %v317
      %v319 = vpop.f32.mrf.mxu0
      %v320 = vadd.f32 0.0, %v319
      %321 = vmatmul.bf16.gmra.mxu0 %v253
      %v322 = vpop.f32.mrf.mxu0
      %v323 = vadd.f32 0.0, %v322
      %v324 = vpop.f32.mrf.mxu0
      %v325 = vadd.f32 0.0, %v324
      %326 = vmatmul.bf16.gmra.mxu0 %v254
      %v327 = vpop.f32.mrf.mxu0
      %v328 = vadd.f32 0.0, %v327
      %v329 = vpop.f32.mrf.mxu0
      %v330 = vadd.f32 0.0, %v329
      %331 = vmatmul.bf16.gmra.mxu0 %v255
      %v332 = vpop.f32.mrf.mxu0
      %v333 = vadd.f32 0.0, %v332
      %v334 = vpop.f32.mrf.mxu0
      %v335 = vadd.f32 0.0, %v334
      %336 = vdwg.mxu0
      %v337 = vld [vmem:[%s205] sm:$0xff]
      %v338 = vld [vmem:[%s205 + $0x8] sm:$0xff]
      %v339 = vld [vmem:[%s205 + $0x10] sm:$0xff]
      %v340 = vld [vmem:[%s205 + $0x18] sm:$0xff]
      %v341 = vld [vmem:[%s205 + $0x20] sm:$0xff]
      %v342 = vld [vmem:[%s205 + $0x28] sm:$0xff]
      %v343 = vld [vmem:[%s205 + $0x30] sm:$0xff]
      %v344 = vld [vmem:[%s205 + $0x38] sm:$0xff]
      %v345 = vmul.f32 %v318, 2.0
      %v346 = vmul.f32 %v320, 2.0
      %v347 = vmul.f32 %v323, 2.0
      %v348 = vmul.f32 %v325, 2.0
      %v349 = vmul.f32 %v328, 2.0
      %v350 = vmul.f32 %v330, 2.0
      %v351 = vmul.f32 %v333, 2.0
      %v352 = vmul.f32 %v335, 2.0
      %354 = vset.pattern.permute.xlu0 0
      %355 = vperm.xlu0 %354, %v337
      %v356 = vpop.permute.xlu0 %355
      %359 = vset.pattern.permute.xlu0 0
      %360 = vperm.xlu0 %359, %v338
      %v361 = vpop.permute.xlu0 %360
      %364 = vset.pattern.permute.xlu0 0
      %365 = vperm.xlu0 %364, %v339
      %v366 = vpop.permute.xlu0 %365
      %369 = vset.pattern.permute.xlu0 0
      %370 = vperm.xlu0 %369, %v340
      %v371 = vpop.permute.xlu0 %370
      %374 = vset.pattern.permute.xlu0 0
      %375 = vperm.xlu0 %374, %v341
      %v376 = vpop.permute.xlu0 %375
      %379 = vset.pattern.permute.xlu0 0
      %380 = vperm.xlu0 %379, %v342
      %v381 = vpop.permute.xlu0 %380
      %384 = vset.pattern.permute.xlu0 0
      %385 = vperm.xlu0 %384, %v343
      %v386 = vpop.permute.xlu0 %385
      %389 = vset.pattern.permute.xlu0 0
      %390 = vperm.xlu0 %389, %v344
      %v391 = vpop.permute.xlu0 %390
      %v393 = vsub.f32 %v356, %v345
      %v394 = vsub.f32 %v361, %v346
      %v395 = vsub.f32 %v366, %v347
      %v396 = vsub.f32 %v371, %v348
      %v397 = vsub.f32 %v376, %v349
      %v398 = vsub.f32 %v381, %v350
      %v399 = vsub.f32 %v386, %v351
      %v400 = vsub.f32 %v391, %v352
      %v401 = vld [vmem:[%s4] sm:$0x1]
      %v402 = vmin.f32 %v393, %v397
      %v403 = vmin.f32 %v394, %v398
      %v404 = vmin.f32 %v395, %v399
      %v405 = vmin.f32 %v396, %v400
      %v406 = vmin.f32 %v402, %v403
      %v407 = vmin.f32 %v404, %v405
      %v408 = vmin.f32 %v406, %v407
      %v409 = vrot.slane %v408, 4
      %v410 = vmin.f32 %v408, %v409
      %v411 = vrot.slane %v410, 2
      %v412 = vmin.f32 %v410, %v411
      %v413 = vrot.slane %v412, 1
      %v414 = vmin.f32 %v412, %v413
      %v415 = vmin.f32 %v401, %v414
      %416 = vst [vmem:[%s4] sm:$0x1] %v415
      %p417 = scmp.eq.s32.totalorder %s15, 1
      // Predicated region
      $region41: #{patchcore_forward.4} parent=35 // pred_check
        %p418 = pneg %p417
      $region42: #{patchcore_forward.4} parent=35 // pred_check_branch
        %420 = sbr.rel (%p418) target = $region44
      $region43: #{patchcore_forward.4} parent=35 // pred_region
        %v421 = vld [vmem:[%s4] sm:$0x1]
        %v422 = vld [vmem:[%s1] sm:$0x1]
        %v423 = vadd.f32 %v421, %v422
        %v424 = vmax.f32 %v423, 0.0
        %v425 = vrsqrt.pop %v424
        %v426 = vmul.f32 %v425, %v424
        %v427 = vmul.f32 %v426, %v425
        %v428 = vmul.f32 0.5, %v427
        %v429 = vsub.f32 1.5, %v428
        %v430 = vmul.f32 %v425, %v429
        %v431 = vmul.f32 %v424, %v430
        %vm432 = vcmp.eq.f32.partialorder %v424, inf
        %v433 = vsel %vm432, %v424, %v431
        %vm434 = vcmp.eq.f32.partialorder %v424, 0.0
        %v435 = vand.u32 %v424, 2147483648
        %v436 = vsel %vm434, %v435, %v433
        %437 = vst [vmem:[%s4] sm:$0x1] %v436
      $region44: #{patchcore_forward.4} parent=35 // pred_fallthru
        _
      // Predicated region
      $region45: #{patchcore_forward.4} parent=35 // pred_check
        %p438 = pneg %p122
      $region46: #{patchcore_forward.4} parent=35 // pred_check_branch
        %440 = sbr.rel (%p438) target = $region48
      $region47: #{patchcore_forward.4} parent=35 // pred_region
        _
      $region48: #{patchcore_forward.4} parent=35 // pred_fallthru
        _
      // Predicated region
      $region49: #{patchcore_forward.4} parent=35 // pred_check
        %p441 = pneg %p122
      $region50: #{patchcore_forward.4} parent=35 // pred_check_branch
        %443 = sbr.rel (%p441) target = $region52
      $region51: #{patchcore_forward.4} parent=35 // pred_region
        _
      $region52: #{patchcore_forward.4} parent=35 // pred_fallthru
        _
    $region36: #{patchcore_forward.4} parent=5 // pred_fallthru
      _
    %p444 = scmp.le.s32.totalorder 2, %s10
    // Predicated region
    $region53: #{patchcore_forward.4} parent=5 // pred_check
      %p445 = pneg %p444
    $region54: #{patchcore_forward.4} parent=5 // pred_check_branch
      %447 = sbr.rel (%p445) target = $region56
    $region55: #{patchcore_forward.4} parent=5 // pred_region
      %s448 = ssub.s32 %s10, 2
    $region56: #{patchcore_forward.4} parent=5 // pred_fallthru
      _
  $region6: #{patchcore_forward.4} parent=0 // loop_footer
    %s14 = sadd.s32 1, %s10
  $region7: #{patchcore_forward.4} parent=0 // loop_footer_branch
    %9 = sbr.rel target = $region3
  $region8: #{patchcore_forward.4} parent=0 // loop_exit
    _

// kernel: patchcore_forward.5
$region0: #{patchcore_forward.5}
  #allocation0 [shape = 'u32[]', space=smem, size = 0x4, offset = 0x4, fixed_abs, tag = 'smem constant byte address 0x4 - core index']
  #allocation1 [shape = 'u32[72,128]{1,0:T(1,128)}', space=vmem, size = 0x9000, scoped, tag = 'internal scratch']
  %s0 = inlined_call_operand.vmem [shape: f32[2,64], index: 0, kind: input, shape index: {}]
  %s1 = inlined_call_operand.vmem [shape: f32[64,1024], index: 1, kind: input, shape index: {}]
  %s2 = inlined_call_operand.vmem [shape: f32[2,1024], index: 2, kind: output, shape index: {}]
  %s3 = sld [smem:[#allocation0]]
  $region18: #{patchcore_forward.5} parent=0
    _
  %s5 = ssub.s32 1, %s3
  %s6 = scalar_select 0, %s5, %s3
  // Predicated region
  $region2: #{patchcore_forward.5} parent=0 // pred_check
    _
  $region3: #{patchcore_forward.5} parent=0 // pred_check_branch
    %8 = sbr.rel (0) target = $region5
  $region4: #{patchcore_forward.5} parent=0 // pred_region
    _
  $region5: #{patchcore_forward.5} parent=0 // pred_fallthru
    _
  // Predicated region
  $region6: #{patchcore_forward.5} parent=0 // pred_check
    _
  $region7: #{patchcore_forward.5} parent=0 // pred_check_branch
    %10 = sbr.rel (0) target = $region9
  $region8: #{patchcore_forward.5} parent=0 // pred_region
    _
  $region9: #{patchcore_forward.5} parent=0 // pred_fallthru
    _
  %v11 = vld [vmem:[%s0] sm:$0x3]
  %v12 = vld [vmem:[%s1] sm:$0xff]
  %v13 = vld [vmem:[%s1 + $0x8] sm:$0xff]
  %v14 = vld [vmem:[%s1 + $0x10] sm:$0xff]
  %v15 = vld [vmem:[%s1 + $0x18] sm:$0xff]
  %v16 = vld [vmem:[%s1 + $0x20] sm:$0xff]
  %v17 = vld [vmem:[%s1 + $0x28] sm:$0xff]
  %v18 = vld [vmem:[%s1 + $0x30] sm:$0xff]
  %v19 = vld [vmem:[%s1 + $0x38] sm:$0xff]
  %v20 = vld [vmem:[%s1 + $0x40] sm:$0xff]
  %v21 = vld [vmem:[%s1 + $0x48] sm:$0xff]
  %v22 = vld [vmem:[%s1 + $0x50] sm:$0xff]
  %v23 = vld [vmem:[%s1 + $0x58] sm:$0xff]
  %v24 = vld [vmem:[%s1 + $0x60] sm:$0xff]
  %v25 = vld [vmem:[%s1 + $0x68] sm:$0xff]
  %v26 = vld [vmem:[%s1 + $0x70] sm:$0xff]
  %v27 = vld [vmem:[%s1 + $0x78] sm:$0xff]
  %v28 = vld [vmem:[%s1 + $0x80] sm:$0xff]
  %v29 = vld [vmem:[%s1 + $0x88] sm:$0xff]
  %v30 = vld [vmem:[%s1 + $0x90] sm:$0xff]
  %v31 = vld [vmem:[%s1 + $0x98] sm:$0xff]
  %v32 = vld [vmem:[%s1 + $0xa0] sm:$0xff]
  %v33 = vld [vmem:[%s1 + $0xa8] sm:$0xff]
  %v34 = vld [vmem:[%s1 + $0xb0] sm:$0xff]
  %v35 = vld [vmem:[%s1 + $0xb8] sm:$0xff]
  %v36 = vld [vmem:[%s1 + $0xc0] sm:$0xff]
  %v37 = vld [vmem:[%s1 + $0xc8] sm:$0xff]
  %v38 = vld [vmem:[%s1 + $0xd0] sm:$0xff]
  %v39 = vld [vmem:[%s1 + $0xd8] sm:$0xff]
  %v40 = vld [vmem:[%s1 + $0xe0] sm:$0xff]
  %v41 = vld [vmem:[%s1 + $0xe8] sm:$0xff]
  %v42 = vld [vmem:[%s1 + $0xf0] sm:$0xff]
  %v43 = vld [vmem:[%s1 + $0xf8] sm:$0xff]
  %v44 = vld [vmem:[%s1 + $0x100] sm:$0xff]
  %v45 = vld [vmem:[%s1 + $0x108] sm:$0xff]
  %v46 = vld [vmem:[%s1 + $0x110] sm:$0xff]
  %v47 = vld [vmem:[%s1 + $0x118] sm:$0xff]
  %v48 = vld [vmem:[%s1 + $0x120] sm:$0xff]
  %v49 = vld [vmem:[%s1 + $0x128] sm:$0xff]
  %v50 = vld [vmem:[%s1 + $0x130] sm:$0xff]
  %v51 = vld [vmem:[%s1 + $0x138] sm:$0xff]
  %v52 = vld [vmem:[%s1 + $0x140] sm:$0xff]
  %v53 = vld [vmem:[%s1 + $0x148] sm:$0xff]
  %v54 = vld [vmem:[%s1 + $0x150] sm:$0xff]
  %v55 = vld [vmem:[%s1 + $0x158] sm:$0xff]
  %v56 = vld [vmem:[%s1 + $0x160] sm:$0xff]
  %v57 = vld [vmem:[%s1 + $0x168] sm:$0xff]
  %v58 = vld [vmem:[%s1 + $0x170] sm:$0xff]
  %v59 = vld [vmem:[%s1 + $0x178] sm:$0xff]
  %v60 = vld [vmem:[%s1 + $0x180] sm:$0xff]
  %v61 = vld [vmem:[%s1 + $0x188] sm:$0xff]
  %v62 = vld [vmem:[%s1 + $0x190] sm:$0xff]
  %v63 = vld [vmem:[%s1 + $0x198] sm:$0xff]
  %v64 = vld [vmem:[%s1 + $0x1a0] sm:$0xff]
  %v65 = vld [vmem:[%s1 + $0x1a8] sm:$0xff]
  %v66 = vld [vmem:[%s1 + $0x1b0] sm:$0xff]
  %v67 = vld [vmem:[%s1 + $0x1b8] sm:$0xff]
  %v68 = vld [vmem:[%s1 + $0x1c0] sm:$0xff]
  %v69 = vld [vmem:[%s1 + $0x1c8] sm:$0xff]
  %v70 = vld [vmem:[%s1 + $0x1d0] sm:$0xff]
  %v71 = vld [vmem:[%s1 + $0x1d8] sm:$0xff]
  %v72 = vld [vmem:[%s1 + $0x1e0] sm:$0xff]
  %v73 = vld [vmem:[%s1 + $0x1e8] sm:$0xff]
  %v74 = vld [vmem:[%s1 + $0x1f0] sm:$0xff]
  %v75 = vld [vmem:[%s1 + $0x1f8] sm:$0xff]
  %vm76 = vcmask 523264
  %v78 = vsel %vm76, %v11, 0
  %80 = vmatpush.msra.mxu0 0.0
  %81 = vmatpush.msra.mxu0 0.0
  %82 = vmatpush.msra.mxu0 0.0
  %83 = vmatpush.msra.mxu0 0.0
  %84 = vmatpush.msra.mxu0 0.0
  %85 = vmatpush.msra.mxu0 0.0
  %86 = vmatpush.msra.mxu0 0.0
  %87 = vmatpush.msra.mxu0 0.0
  %88 = vmatpush.msra.mxu0 %v68
  %89 = vmatpush.msra.mxu0 %v60
  %90 = vmatpush.msra.mxu0 %v52
  %91 = vmatpush.msra.mxu0 %v44
  %92 = vmatpush.msra.mxu0 %v36
  %93 = vmatpush.msra.mxu0 %v28
  %94 = vmatpush.msra.mxu0 %v20
  %95 = vmatpush.msra.mxu0 %v12
  %96 = vmatmul.f32.gmra.mxu0 %v78
  %v97 = vpop.f32.mrf.mxu0
  %v98 = vadd.f32 0.0, %v97
  %99 = vdwg.mxu0
  %100 = vmatpush.msra.mxu0 0.0
  %101 = vmatpush.msra.mxu0 0.0
  %102 = vmatpush.msra.mxu0 0.0
  %103 = vmatpush.msra.mxu0 0.0
  %104 = vmatpush.msra.mxu0 0.0
  %105 = vmatpush.msra.mxu0 0.0
  %106 = vmatpush.msra.mxu0 0.0
  %107 = vmatpush.msra.mxu0 0.0
  %108 = vmatpush.msra.mxu0 %v69
  %109 = vmatpush.msra.mxu0 %v61
  %110 = vmatpush.msra.mxu0 %v53
  %111 = vmatpush.msra.mxu0 %v45
  %112 = vmatpush.msra.mxu0 %v37
  %113 = vmatpush.msra.mxu0 %v29
  %114 = vmatpush.msra.mxu0 %v21
  %115 = vmatpush.msra.mxu0 %v13
  %116 = vmatmul.f32.gmra.mxu0 %v78
  %v117 = vpop.f32.mrf.mxu0
  %v118 = vadd.f32 0.0, %v117
  %119 = vdwg.mxu0
  %120 = vmatpush.msra.mxu0 0.0
  %121 = vmatpush.msra.mxu0 0.0
  %122 = vmatpush.msra.mxu0 0.0
  %123 = vmatpush.msra.mxu0 0.0
  %124 = vmatpush.msra.mxu0 0.0
  %125 = vmatpush.msra.mxu0 0.0
  %126 = vmatpush.msra.mxu0 0.0
  %127 = vmatpush.msra.mxu0 0.0
  %128 = vmatpush.msra.mxu0 %v70
  %129 = vmatpush.msra.mxu0 %v62
  %130 = vmatpush.msra.mxu0 %v54
  %131 = vmatpush.msra.mxu0 %v46
  %132 = vmatpush.msra.mxu0 %v38
  %133 = vmatpush.msra.mxu0 %v30
  %134 = vmatpush.msra.mxu0 %v22
  %135 = vmatpush.msra.mxu0 %v14
  %136 = vmatmul.f32.gmra.mxu0 %v78
  %v137 = vpop.f32.mrf.mxu0
  %v138 = vadd.f32 0.0, %v137
  %139 = vdwg.mxu0
  %140 = vmatpush.msra.mxu0 0.0
  %141 = vmatpush.msra.mxu0 0.0
  %142 = vmatpush.msra.mxu0 0.0
  %143 = vmatpush.msra.mxu0 0.0
  %144 = vmatpush.msra.mxu0 0.0
  %145 = vmatpush.msra.mxu0 0.0
  %146 = vmatpush.msra.mxu0 0.0
  %147 = vmatpush.msra.mxu0 0.0
  %148 = vmatpush.msra.mxu0 %v71
  %149 = vmatpush.msra.mxu0 %v63
  %150 = vmatpush.msra.mxu0 %v55
  %151 = vmatpush.msra.mxu0 %v47
  %152 = vmatpush.msra.mxu0 %v39
  %153 = vmatpush.msra.mxu0 %v31
  %154 = vmatpush.msra.mxu0 %v23
  %155 = vmatpush.msra.mxu0 %v15
  %156 = vmatmul.f32.gmra.mxu0 %v78
  %v157 = vpop.f32.mrf.mxu0
  %v158 = vadd.f32 0.0, %v157
  %159 = vdwg.mxu0
  %160 = vmatpush.msra.mxu0 0.0
  %161 = vmatpush.msra.mxu0 0.0
  %162 = vmatpush.msra.mxu0 0.0
  %163 = vmatpush.msra.mxu0 0.0
  %164 = vmatpush.msra.mxu0 0.0
  %165 = vmatpush.msra.mxu0 0.0
  %166 = vmatpush.msra.mxu0 0.0
  %167 = vmatpush.msra.mxu0 0.0
  %168 = vmatpush.msra.mxu0 %v72
  %169 = vmatpush.msra.mxu0 %v64
  %170 = vmatpush.msra.mxu0 %v56
  %171 = vmatpush.msra.mxu0 %v48
  %172 = vmatpush.msra.mxu0 %v40
  %173 = vmatpush.msra.mxu0 %v32
  %174 = vmatpush.msra.mxu0 %v24
  %175 = vmatpush.msra.mxu0 %v16
  %176 = vmatmul.f32.gmra.mxu0 %v78
  %v177 = vpop.f32.mrf.mxu0
  %v178 = vadd.f32 0.0, %v177
  %179 = vdwg.mxu0
  %180 = vmatpush.msra.mxu0 0.0
  %181 = vmatpush.msra.mxu0 0.0
  %182 = vmatpush.msra.mxu0 0.0
  %183 = vmatpush.msra.mxu0 0.0
  %184 = vmatpush.msra.mxu0 0.0
  %185 = vmatpush.msra.mxu0 0.0
  %186 = vmatpush.msra.mxu0 0.0
  %187 = vmatpush.msra.mxu0 0.0
  %188 = vmatpush.msra.mxu0 %v73
  %189 = vmatpush.msra.mxu0 %v65
  %190 = vmatpush.msra.mxu0 %v57
  %191 = vmatpush.msra.mxu0 %v49
  %192 = vmatpush.msra.mxu0 %v41
  %193 = vmatpush.msra.mxu0 %v33
  %194 = vmatpush.msra.mxu0 %v25
  %195 = vmatpush.msra.mxu0 %v17
  %196 = vmatmul.f32.gmra.mxu0 %v78
  %v197 = vpop.f32.mrf.mxu0
  %v198 = vadd.f32 0.0, %v197
  %199 = vdwg.mxu0
  %200 = vmatpush.msra.mxu0 0.0
  %201 = vmatpush.msra.mxu0 0.0
  %202 = vmatpush.msra.mxu0 0.0
  %203 = vmatpush.msra.mxu0 0.0
  %204 = vmatpush.msra.mxu0 0.0
  %205 = vmatpush.msra.mxu0 0.0
  %206 = vmatpush.msra.mxu0 0.0
  %207 = vmatpush.msra.mxu0 0.0
  %208 = vmatpush.msra.mxu0 %v74
  %209 = vmatpush.msra.mxu0 %v66
  %210 = vmatpush.msra.mxu0 %v58
  %211 = vmatpush.msra.mxu0 %v50
  %212 = vmatpush.msra.mxu0 %v42
  %213 = vmatpush.msra.mxu0 %v34
  %214 = vmatpush.msra.mxu0 %v26
  %215 = vmatpush.msra.mxu0 %v18
  %216 = vmatmul.f32.gmra.mxu0 %v78
  %v217 = vpop.f32.mrf.mxu0
  %v218 = vadd.f32 0.0, %v217
  %219 = vdwg.mxu0
  %220 = vmatpush.msra.mxu0 0.0
  %221 = vmatpush.msra.mxu0 0.0
  %222 = vmatpush.msra.mxu0 0.0
  %223 = vmatpush.msra.mxu0 0.0
  %224 = vmatpush.msra.mxu0 0.0
  %225 = vmatpush.msra.mxu0 0.0
  %226 = vmatpush.msra.mxu0 0.0
  %227 = vmatpush.msra.mxu0 0.0
  %228 = vmatpush.msra.mxu0 %v75
  %229 = vmatpush.msra.mxu0 %v67
  %230 = vmatpush.msra.mxu0 %v59
  %231 = vmatpush.msra.mxu0 %v51
  %232 = vmatpush.msra.mxu0 %v43
  %233 = vmatpush.msra.mxu0 %v35
  %234 = vmatpush.msra.mxu0 %v27
  %235 = vmatpush.msra.mxu0 %v19
  %236 = vmatmul.f32.gmra.mxu0 %v78
  %v237 = vpop.f32.mrf.mxu0
  %v238 = vadd.f32 0.0, %v237
  %239 = vdwg.mxu0
  %v248 = vrot.slane %v118, 6
  %v249 = vrot.slane %v138, 4
  %v250 = vrot.slane %v158, 2
  %v251 = vrot.slane %v198, 6
  %v252 = vrot.slane %v218, 4
  %v253 = vrot.slane %v238, 2
  %vm254 = vcmask 1041408
  %v255 = vsel %vm254, %v98, %v248
  %vm256 = vcmask 1045508
  %v257 = vsel %vm256, %v249, %v250
  %vm258 = vcmask 1043456
  %v259 = vsel %vm258, %v255, %v257
  %v260 = vsel %vm254, %v178, %v251
  %v261 = vsel %vm256, %v252, %v253
  %v262 = vsel %vm258, %v260, %v261
  %265 = vst [vmem:[%s2] sm:$0xff] %v259
  %266 = vst [vmem:[%s2 + $0x8] sm:$0xff] %v262
  // Predicated region
  $region10: #{patchcore_forward.5} parent=0 // pred_check
    _
  $region11: #{patchcore_forward.5} parent=0 // pred_check_branch
    %268 = sbr.rel (0) target = $region13
  $region12: #{patchcore_forward.5} parent=0 // pred_region
    _
  $region13: #{patchcore_forward.5} parent=0 // pred_fallthru
    _
  // Predicated region
  $region14: #{patchcore_forward.5} parent=0 // pred_check
    _
  $region15: #{patchcore_forward.5} parent=0 // pred_check_branch
    %270 = sbr.rel (0) target = $region17
  $region16: #{patchcore_forward.5} parent=0 // pred_region
    _
  $region17: #{patchcore_forward.5} parent=0 // pred_fallthru
    _

// kernel: patchcore_forward.3
$region0: #{patchcore_forward.3}
  #allocation0 [shape = 'u32[]', space=smem, size = 0x4, offset = 0x4, fixed_abs, tag = 'smem constant byte address 0x4 - core index']
  #allocation1 [shape = 'u32[72,128]{1,0:T(1,128)}', space=vmem, size = 0x9000, scoped, tag = 'internal scratch']
  %s0 = inlined_call_operand.vmem [shape: f32[2,1024,4], index: 0, kind: input, shape index: {}]
  %s1 = inlined_call_operand.vmem [shape: f32[64,1024], index: 1, kind: input, shape index: {}]
  %s2 = inlined_call_operand.vmem [shape: f32[4,64], index: 2, kind: input, shape index: {}]
  %s3 = inlined_call_operand.vmem [shape: f32[1,64], index: 3, kind: input, shape index: {}]
  %s4 = inlined_call_operand.vmem [shape: f32[64,64], index: 4, kind: input, shape index: {}]
  %s5 = inlined_call_operand.vmem [shape: f32[16,64], index: 5, kind: input, shape index: {}]
  %s6 = inlined_call_operand.vmem [shape: f32[64,64], index: 6, kind: input, shape index: {}]
  %s7 = inlined_call_operand.vmem [shape: f32[1,64], index: 7, kind: input, shape index: {}]
  %s8 = inlined_call_operand.vmem [shape: f32[64,16], index: 8, kind: input, shape index: {}]
  %s9 = inlined_call_operand.vmem [shape: f32[2,64,128], index: 9, kind: output, shape index: {}]
  %s10 = sld [smem:[#allocation0]]
  $region69: #{patchcore_forward.3} parent=0
    _
  %s12 = ssub.s32 1, %s10
  %s13 = scalar_select 0, %s12, %s10
  loop: start=0, step=1, limit=4
  $region2: #{patchcore_forward.3} parent=0 // loop_pre_header
    _
  $region3: #{patchcore_forward.3} parent=0 // loop_header
    %s15 = sphi 0, %s19
    %p16 = scmp.ge.s32.totalorder %s15, 4
    %s25 = sphi 0, %s27
    %s28 = sphi 0, %s25
    %s29 = sphi 0, %s28
    %s45 = sphi 0, %s29
    %s49 = sphi 0, %s49
    %s51 = sphi 0, %s49
    %s52 = sphi 0, %s51
    %s66 = sphi 0, %s52
    %s70 = sphi 0, %s70
    %s72 = sphi 0, %s70
    %s73 = sphi 0, %s72
    %s87 = sphi 0, %s73
    %s91 = sphi 0, %s91
    %s93 = sphi 0, %s91
    %s94 = sphi 0, %s93
    %s108 = sphi 0, %s94
    %s112 = sphi 0, %s112
    %s114 = sphi 0, %s112
    %s115 = sphi 0, %s114
    %s129 = sphi 0, %s115
    %s133 = sphi 0, %s133
    %s135 = sphi 0, %s133
    %s136 = sphi 0, %s135
    %s150 = sphi 0, %s136
    %s154 = sphi 0, %s154
    %s156 = sphi 0, %s154
    %s157 = sphi 0, %s156
    %s171 = sphi 0, %s157
    %s175 = sphi 0, %s175
    %s177 = sphi 0, %s175
    %s178 = sphi 0, %s177
    %s192 = sphi 0, %s178
    %s196 = sphi 0, %s196
    %s198 = sphi 0, %s196
    %s199 = sphi 0, %s198
    %s213 = sphi 0, %s199
    %s219 = sphi 0, %s221
    %s222 = sphi 0, %s219
    %s223 = sphi 0, %s222
    %s239 = sphi 0, %s223
  $region4: #{patchcore_forward.3} parent=0 // loop_header_branch
    %18 = sbr.rel (%p16) target = $region8
  $region5: #{patchcore_forward.3} parent=0 // loop_body
    %s20 = ssub.s32 %s15, 1
    %s21 = ssub.s32 %s15, 2
    %s22 = sadd.s32 %s15, 1
    %s23 = ssub.s32 %s15, %s22
    %p24 = scmp.eq.s32.totalorder %s23, 0
    %s26 = sadd.s32 %s25, 1
    %s27 = scalar_select %p24, %s25, %s26
    %p30 = pneg %p24
    %p31 = scmp.eq.s32.totalorder %s15, 1
    %p32 = por %p30, %p31
    %p33 = scmp.ne.s32.totalorder %s25, %s28
    %p34 = scmp.eq.s32.totalorder %s15, 0
    %p35 = por %p33, %p34
    %p36 = scmp.ne.s32.totalorder %s25, %s28
    %p37 = scmp.eq.s32.totalorder %s20, 1
    %p38 = por %p36, %p37
    %p39 = scmp.ne.s32.totalorder %s28, %s29
    %p40 = scmp.eq.s32.totalorder %s20, 0
    %p41 = por %p39, %p40
    %p42 = scmp.ne.s32.totalorder %s28, %s29
    %p43 = scmp.eq.s32.totalorder %s21, 1
    %p44 = por %p42, %p43
    %p46 = scmp.ne.s32.totalorder %s29, %s45
    %p47 = scmp.eq.s32.totalorder %s21, 0
    %p48 = por %p46, %p47
    %s50 = sadd.s32 %s49, 1
    %p53 = scmp.eq.s32.totalorder %s15, 1
    %p54 = scmp.ne.s32.totalorder %s49, %s51
    %p55 = scmp.eq.s32.totalorder %s15, 0
    %p56 = por %p54, %p55
    %p57 = scmp.ne.s32.totalorder %s49, %s51
    %p58 = scmp.eq.s32.totalorder %s20, 1
    %p59 = por %p57, %p58
    %p60 = scmp.ne.s32.totalorder %s51, %s52
    %p61 = scmp.eq.s32.totalorder %s20, 0
    %p62 = por %p60, %p61
    %p63 = scmp.ne.s32.totalorder %s51, %s52
    %p64 = scmp.eq.s32.totalorder %s21, 1
    %p65 = por %p63, %p64
    %p67 = scmp.ne.s32.totalorder %s52, %s66
    %p68 = scmp.eq.s32.totalorder %s21, 0
    %p69 = por %p67, %p68
    %s71 = sadd.s32 %s70, 1
    %p74 = scmp.eq.s32.totalorder %s15, 1
    %p75 = scmp.ne.s32.totalorder %s70, %s72
    %p76 = scmp.eq.s32.totalorder %s15, 0
    %p77 = por %p75, %p76
    %p78 = scmp.ne.s32.totalorder %s70, %s72
    %p79 = scmp.eq.s32.totalorder %s20, 1
    %p80 = por %p78, %p79
    %p81 = scmp.ne.s32.totalorder %s72, %s73
    %p82 = scmp.eq.s32.totalorder %s20, 0
    %p83 = por %p81, %p82
    %p84 = scmp.ne.s32.totalorder %s72, %s73
    %p85 = scmp.eq.s32.totalorder %s21, 1
    %p86 = por %p84, %p85
    %p88 = scmp.ne.s32.totalorder %s73, %s87
    %p89 = scmp.eq.s32.totalorder %s21, 0
    %p90 = por %p88, %p89
    %s92 = sadd.s32 %s91, 1
    %p95 = scmp.eq.s32.totalorder %s15, 1
    %p96 = scmp.ne.s32.totalorder %s91, %s93
    %p97 = scmp.eq.s32.totalorder %s15, 0
    %p98 = por %p96, %p97
    %p99 = scmp.ne.s32.totalorder %s91, %s93
    %p100 = scmp.eq.s32.totalorder %s20, 1
    %p101 = por %p99, %p100
    %p102 = scmp.ne.s32.totalorder %s93, %s94
    %p103 = scmp.eq.s32.totalorder %s20, 0
    %p104 = por %p102, %p103
    %p105 = scmp.ne.s32.totalorder %s93, %s94
    %p106 = scmp.eq.s32.totalorder %s21, 1
    %p107 = por %p105, %p106
    %p109 = scmp.ne.s32.totalorder %s94, %s108
    %p110 = scmp.eq.s32.totalorder %s21, 0
    %p111 = por %p109, %p110
    %s113 = sadd.s32 %s112, 1
    %p116 = scmp.eq.s32.totalorder %s15, 1
    %p117 = scmp.ne.s32.totalorder %s112, %s114
    %p118 = scmp.eq.s32.totalorder %s15, 0
    %p119 = por %p117, %p118
    %p120 = scmp.ne.s32.totalorder %s112, %s114
    %p121 = scmp.eq.s32.totalorder %s20, 1
    %p122 = por %p120, %p121
    %p123 = scmp.ne.s32.totalorder %s114, %s115
    %p124 = scmp.eq.s32.totalorder %s20, 0
    %p125 = por %p123, %p124
    %p126 = scmp.ne.s32.totalorder %s114, %s115
    %p127 = scmp.eq.s32.totalorder %s21, 1
    %p128 = por %p126, %p127
    %p130 = scmp.ne.s32.totalorder %s115, %s129
    %p131 = scmp.eq.s32.totalorder %s21, 0
    %p132 = por %p130, %p131
    %s134 = sadd.s32 %s133, 1
    %p137 = scmp.eq.s32.totalorder %s15, 1
    %p138 = scmp.ne.s32.totalorder %s133, %s135
    %p139 = scmp.eq.s32.totalorder %s15, 0
    %p140 = por %p138, %p139
    %p141 = scmp.ne.s32.totalorder %s133, %s135
    %p142 = scmp.eq.s32.totalorder %s20, 1
    %p143 = por %p141, %p142
    %p144 = scmp.ne.s32.totalorder %s135, %s136
    %p145 = scmp.eq.s32.totalorder %s20, 0
    %p146 = por %p144, %p145
    %p147 = scmp.ne.s32.totalorder %s135, %s136
    %p148 = scmp.eq.s32.totalorder %s21, 1
    %p149 = por %p147, %p148
    %p151 = scmp.ne.s32.totalorder %s136, %s150
    %p152 = scmp.eq.s32.totalorder %s21, 0
    %p153 = por %p151, %p152
    %s155 = sadd.s32 %s154, 1
    %p158 = scmp.eq.s32.totalorder %s15, 1
    %p159 = scmp.ne.s32.totalorder %s154, %s156
    %p160 = scmp.eq.s32.totalorder %s15, 0
    %p161 = por %p159, %p160
    %p162 = scmp.ne.s32.totalorder %s154, %s156
    %p163 = scmp.eq.s32.totalorder %s20, 1
    %p164 = por %p162, %p163
    %p165 = scmp.ne.s32.totalorder %s156, %s157
    %p166 = scmp.eq.s32.totalorder %s20, 0
    %p167 = por %p165, %p166
    %p168 = scmp.ne.s32.totalorder %s156, %s157
    %p169 = scmp.eq.s32.totalorder %s21, 1
    %p170 = por %p168, %p169
    %p172 = scmp.ne.s32.totalorder %s157, %s171
    %p173 = scmp.eq.s32.totalorder %s21, 0
    %p174 = por %p172, %p173
    %s176 = sadd.s32 %s175, 1
    %p179 = scmp.eq.s32.totalorder %s15, 1
    %p180 = scmp.ne.s32.totalorder %s175, %s177
    %p181 = scmp.eq.s32.totalorder %s15, 0
    %p182 = por %p180, %p181
    %p183 = scmp.ne.s32.totalorder %s175, %s177
    %p184 = scmp.eq.s32.totalorder %s20, 1
    %p185 = por %p183, %p184
    %p186 = scmp.ne.s32.totalorder %s177, %s178
    %p187 = scmp.eq.s32.totalorder %s20, 0
    %p188 = por %p186, %p187
    %p189 = scmp.ne.s32.totalorder %s177, %s178
    %p190 = scmp.eq.s32.totalorder %s21, 1
    %p191 = por %p189, %p190
    %p193 = scmp.ne.s32.totalorder %s178, %s192
    %p194 = scmp.eq.s32.totalorder %s21, 0
    %p195 = por %p193, %p194
    %s197 = sadd.s32 %s196, 1
    %p200 = scmp.eq.s32.totalorder %s15, 1
    %p201 = scmp.ne.s32.totalorder %s196, %s198
    %p202 = scmp.eq.s32.totalorder %s15, 0
    %p203 = por %p201, %p202
    %p204 = scmp.ne.s32.totalorder %s196, %s198
    %p205 = scmp.eq.s32.totalorder %s20, 1
    %p206 = por %p204, %p205
    %p207 = scmp.ne.s32.totalorder %s198, %s199
    %p208 = scmp.eq.s32.totalorder %s20, 0
    %p209 = por %p207, %p208
    %p210 = scmp.ne.s32.totalorder %s198, %s199
    %p211 = scmp.eq.s32.totalorder %s21, 1
    %p212 = por %p210, %p211
    %p214 = scmp.ne.s32.totalorder %s199, %s213
    %p215 = scmp.eq.s32.totalorder %s21, 0
    %p216 = por %p214, %p215
    %s217 = ssub.s32 %s15, %s22
    %p218 = scmp.eq.s32.totalorder %s217, 0
    %s220 = sadd.s32 %s219, 1
    %s221 = scalar_select %p218, %s219, %s220
    %p224 = pneg %p218
    %p225 = scmp.eq.s32.totalorder %s15, 1
    %p226 = por %p224, %p225
    %p227 = scmp.ne.s32.totalorder %s219, %s222
    %p228 = scmp.eq.s32.totalorder %s15, 0
    %p229 = por %p227, %p228
    %p230 = scmp.ne.s32.totalorder %s219, %s222
    %p231 = scmp.eq.s32.totalorder %s20, 1
    %p232 = por %p230, %p231
    %p233 = scmp.ne.s32.totalorder %s222, %s223
    %p234 = scmp.eq.s32.totalorder %s20, 0
    %p235 = por %p233, %p234
    %p236 = scmp.ne.s32.totalorder %s222, %s223
    %p237 = scmp.eq.s32.totalorder %s21, 1
    %p238 = por %p236, %p237
    %p240 = scmp.ne.s32.totalorder %s223, %s239
    %p241 = scmp.eq.s32.totalorder %s21, 0
    %p242 = por %p240, %p241
    %p243 = scmp.le.s32.totalorder 1, %s15
    %p244 = scmp.lt.s32.totalorder %s15, 3
    %p245 = pnand %p243, %p244
    %p246 = pneg %p245
    // Predicated region
    $region9: #{patchcore_forward.3} parent=5 // pred_check
      _
    $region10: #{patchcore_forward.3} parent=5 // pred_check_branch
      %248 = sbr.rel (%p245) target = $region12
    $region11: #{patchcore_forward.3} parent=5 // pred_region
      %s249 = ssub.s32 %s15, 1
      // Predicated region
      $region13: #{patchcore_forward.3} parent=11 // pred_check
        %p250 = pneg %p62
      $region14: #{patchcore_forward.3} parent=11 // pred_check_branch
        %252 = sbr.rel (%p250) target = $region16
      $region15: #{patchcore_forward.3} parent=11 // pred_region
        _
      $region16: #{patchcore_forward.3} parent=11 // pred_fallthru
        _
      // Predicated region
      $region17: #{patchcore_forward.3} parent=11 // pred_check
        %p253 = pneg %p83
      $region18: #{patchcore_forward.3} parent=11 // pred_check_branch
        %255 = sbr.rel (%p253) target = $region20
      $region19: #{patchcore_forward.3} parent=11 // pred_region
        _
      $region20: #{patchcore_forward.3} parent=11 // pred_fallthru
        _
      // Predicated region
      $region21: #{patchcore_forward.3} parent=11 // pred_check
        %p256 = pneg %p104
      $region22: #{patchcore_forward.3} parent=11 // pred_check_branch
        %258 = sbr.rel (%p256) target = $region24
      $region23: #{patchcore_forward.3} parent=11 // pred_region
        _
      $region24: #{patchcore_forward.3} parent=11 // pred_fallthru
        _
      // Predicated region
      $region25: #{patchcore_forward.3} parent=11 // pred_check
        %p259 = pneg %p125
      $region26: #{patchcore_forward.3} parent=11 // pred_check_branch
        %261 = sbr.rel (%p259) target = $region28
      $region27: #{patchcore_forward.3} parent=11 // pred_region
        _
      $region28: #{patchcore_forward.3} parent=11 // pred_fallthru
        _
      // Predicated region
      $region29: #{patchcore_forward.3} parent=11 // pred_check
        %p262 = pneg %p146
      $region30: #{patchcore_forward.3} parent=11 // pred_check_branch
        %264 = sbr.rel (%p262) target = $region32
      $region31: #{patchcore_forward.3} parent=11 // pred_region
        _
      $region32: #{patchcore_forward.3} parent=11 // pred_fallthru
        _
      // Predicated region
      $region33: #{patchcore_forward.3} parent=11 // pred_check
        %p265 = pneg %p167
      $region34: #{patchcore_forward.3} parent=11 // pred_check_branch
        %267 = sbr.rel (%p265) target = $region36
      $region35: #{patchcore_forward.3} parent=11 // pred_region
        _
      $region36: #{patchcore_forward.3} parent=11 // pred_fallthru
        _
      // Predicated region
      $region37: #{patchcore_forward.3} parent=11 // pred_check
        %p268 = pneg %p188
      $region38: #{patchcore_forward.3} parent=11 // pred_check_branch
        %270 = sbr.rel (%p268) target = $region40
      $region39: #{patchcore_forward.3} parent=11 // pred_region
        _
      $region40: #{patchcore_forward.3} parent=11 // pred_fallthru
        _
      // Predicated region
      $region41: #{patchcore_forward.3} parent=11 // pred_check
        %p271 = pneg %p209
      $region42: #{patchcore_forward.3} parent=11 // pred_check_branch
        %273 = sbr.rel (%p271) target = $region44
      $region43: #{patchcore_forward.3} parent=11 // pred_region
        _
      $region44: #{patchcore_forward.3} parent=11 // pred_fallthru
        _
    $region12: #{patchcore_forward.3} parent=5 // pred_fallthru
      _
    %p274 = scmp.lt.s32.totalorder %s15, 2
    // Predicated region
    $region45: #{patchcore_forward.3} parent=5 // pred_check
      %p275 = pneg %p274
    $region46: #{patchcore_forward.3} parent=5 // pred_check_branch
      %277 = sbr.rel (%p275) target = $region48
    $region47: #{patchcore_forward.3} parent=5 // pred_region
      // Predicated region
      $region49: #{patchcore_forward.3} parent=47 // pred_check
        %p278 = pneg %p35
      $region50: #{patchcore_forward.3} parent=47 // pred_check_branch
        %280 = sbr.rel (%p278) target = $region52
      $region51: #{patchcore_forward.3} parent=47 // pred_region
        %p281 = scmp.lt.s32.totalorder %s15, 1
        %s282 = scalar_select %p281, %s15, 1
        %s283 = smul.addr %s282, 128
        %s284 = smul.addr %s283, 8
        %s285 = scalar_lea.vmem %s0, %s284
      $region52: #{patchcore_forward.3} parent=47 // pred_fallthru
        _
    $region48: #{patchcore_forward.3} parent=5 // pred_fallthru
      _
    %p286 = scmp.le.s32.totalorder 1, %s15
    %p287 = scmp.lt.s32.totalorder %s15, 3
    %p288 = pnand %p286, %p287
    %p289 = pneg %p288
    // Predicated region
    $region53: #{patchcore_forward.3} parent=5 // pred_check
      _
    $region54: #{patchcore_forward.3} parent=5 // pred_check_branch
      %291 = sbr.rel (%p288) target = $region56
    $region55: #{patchcore_forward.3} parent=5 // pred_region
      %s292 = ssub.s32 %s15, 1
      %p293 = scmp.lt.s32.totalorder %s20, 1
      %s294 = scalar_select %p293, %s20, 1
      %s295 = smul.addr %s294, 128
      %s296 = smul.addr %s295, 8
      %s297 = scalar_lea.vmem %s0, %s296
      %p298 = pneg %p41
      %p299 = pneg %p38
      %p300 = pneg %p62
      %p301 = pneg %p59
      %p302 = pneg %p83
      %p303 = pneg %p80
      %p304 = pneg %p104
      %p305 = pneg %p101
      %p306 = pneg %p125
      %p307 = pneg %p122
      %p308 = pneg %p146
      %p309 = pneg %p143
      %p310 = pneg %p167
      %p311 = pneg %p164
      %p312 = pneg %p188
      %p313 = pneg %p185
      %p314 = pneg %p209
      %p315 = pneg %p206
      %p316 = pneg %p235
      %p317 = pneg %p232
      %p318 = scmp.lt.s32.totalorder %s20, 1
      %s319 = scalar_select %p318, %s20, 1
      %s320 = smul.addr %s319, 8
      %s321 = smul.addr %s320, 8
      %s322 = scalar_lea.vmem %s9, %s321
      %p323 = scmp.lt.s32.totalorder %s20, 1
      %s324 = scalar_select %p323, %s20, 1
      %s325 = smul.addr %s324, 128
      %s326 = smul.addr %s325, 8
      %s327 = scalar_lea.vmem %s0, %s326
      %p328 = scmp.lt.s32.totalorder %s20, 1
      %s329 = scalar_select %p328, %s20, 1
      %s330 = smul.addr %s329, 8
      %s331 = smul.addr %s330, 8
      %s332 = scalar_lea.vmem %s9, %s331
      %v333 = vld [vmem:[%s327] sm:$0xff]
      %v334 = vld [vmem:[%s327 + $0x8] sm:$0xff]
      %v335 = vld [vmem:[%s327 + $0x10] sm:$0xff]
      %v336 = vld [vmem:[%s327 + $0x18] sm:$0xff]
      %v337 = vld [vmem:[%s327 + $0x20] sm:$0xff]
      %v338 = vld [vmem:[%s327 + $0x28] sm:$0xff]
      %v339 = vld [vmem:[%s327 + $0x30] sm:$0xff]
      %v340 = vld [vmem:[%s327 + $0x38] sm:$0xff]
      %v341 = vld [vmem:[%s327 + $0x40] sm:$0xff]
      %v342 = vld [vmem:[%s327 + $0x48] sm:$0xff]
      %v343 = vld [vmem:[%s327 + $0x50] sm:$0xff]
      %v344 = vld [vmem:[%s327 + $0x58] sm:$0xff]
      %v345 = vld [vmem:[%s327 + $0x60] sm:$0xff]
      %v346 = vld [vmem:[%s327 + $0x68] sm:$0xff]
      %v347 = vld [vmem:[%s327 + $0x70] sm:$0xff]
      %v348 = vld [vmem:[%s327 + $0x78] sm:$0xff]
      %v349 = vld [vmem:[%s327 + $0x80] sm:$0xff]
      %v350 = vld [vmem:[%s327 + $0x88] sm:$0xff]
      %v351 = vld [vmem:[%s327 + $0x90] sm:$0xff]
      %v352 = vld [vmem:[%s327 + $0x98] sm:$0xff]
      %v353 = vld [vmem:[%s327 + $0xa0] sm:$0xff]
      %v354 = vld [vmem:[%s327 + $0xa8] sm:$0xff]
      %v355 = vld [vmem:[%s327 + $0xb0] sm:$0xff]
      %v356 = vld [vmem:[%s327 + $0xb8] sm:$0xff]
      %v357 = vld [vmem:[%s327 + $0xc0] sm:$0xff]
      %v358 = vld [vmem:[%s327 + $0xc8] sm:$0xff]
      %v359 = vld [vmem:[%s327 + $0xd0] sm:$0xff]
      %v360 = vld [vmem:[%s327 + $0xd8] sm:$0xff]
      %v361 = vld [vmem:[%s327 + $0xe0] sm:$0xff]
      %v362 = vld [vmem:[%s327 + $0xe8] sm:$0xff]
      %v363 = vld [vmem:[%s327 + $0xf0] sm:$0xff]
      %v364 = vld [vmem:[%s327 + $0xf8] sm:$0xff]
      %v365 = vld [vmem:[%s327 + $0x100] sm:$0xff]
      %v366 = vld [vmem:[%s327 + $0x108] sm:$0xff]
      %v367 = vld [vmem:[%s327 + $0x110] sm:$0xff]
      %v368 = vld [vmem:[%s327 + $0x118] sm:$0xff]
      %v369 = vld [vmem:[%s327 + $0x120] sm:$0xff]
      %v370 = vld [vmem:[%s327 + $0x128] sm:$0xff]
      %v371 = vld [vmem:[%s327 + $0x130] sm:$0xff]
      %v372 = vld [vmem:[%s327 + $0x138] sm:$0xff]
      %v373 = vld [vmem:[%s327 + $0x140] sm:$0xff]
      %v374 = vld [vmem:[%s327 + $0x148] sm:$0xff]
      %v375 = vld [vmem:[%s327 + $0x150] sm:$0xff]
      %v376 = vld [vmem:[%s327 + $0x158] sm:$0xff]
      %v377 = vld [vmem:[%s327 + $0x160] sm:$0xff]
      %v378 = vld [vmem:[%s327 + $0x168] sm:$0xff]
      %v379 = vld [vmem:[%s327 + $0x170] sm:$0xff]
      %v380 = vld [vmem:[%s327 + $0x178] sm:$0xff]
      %v381 = vld [vmem:[%s327 + $0x180] sm:$0xff]
      %v382 = vld [vmem:[%s327 + $0x188] sm:$0xff]
      %v383 = vld [vmem:[%s327 + $0x190] sm:$0xff]
      %v384 = vld [vmem:[%s327 + $0x198] sm:$0xff]
      %v385 = vld [vmem:[%s327 + $0x1a0] sm:$0xff]
      %v386 = vld [vmem:[%s327 + $0x1a8] sm:$0xff]
      %v387 = vld [vmem:[%s327 + $0x1b0] sm:$0xff]
      %v388 = vld [vmem:[%s327 + $0x1b8] sm:$0xff]
      %v389 = vld [vmem:[%s327 + $0x1c0] sm:$0xff]
      %v390 = vld [vmem:[%s327 + $0x1c8] sm:$0xff]
      %v391 = vld [vmem:[%s327 + $0x1d0] sm:$0xff]
      %v392 = vld [vmem:[%s327 + $0x1d8] sm:$0xff]
      %v393 = vld [vmem:[%s327 + $0x1e0] sm:$0xff]
      %v394 = vld [vmem:[%s327 + $0x1e8] sm:$0xff]
      %v395 = vld [vmem:[%s327 + $0x1f0] sm:$0xff]
      %v396 = vld [vmem:[%s327 + $0x1f8] sm:$0xff]
      %v397 = vld [vmem:[%s327 + $0x200] sm:$0xff]
      %v398 = vld [vmem:[%s327 + $0x208] sm:$0xff]
      %v399 = vld [vmem:[%s327 + $0x210] sm:$0xff]
      %v400 = vld [vmem:[%s327 + $0x218] sm:$0xff]
      %v401 = vld [vmem:[%s327 + $0x220] sm:$0xff]
      %v402 = vld [vmem:[%s327 + $0x228] sm:$0xff]
      %v403 = vld [vmem:[%s327 + $0x230] sm:$0xff]
      %v404 = vld [vmem:[%s327 + $0x238] sm:$0xff]
      %v405 = vld [vmem:[%s327 + $0x240] sm:$0xff]
      %v406 = vld [vmem:[%s327 + $0x248] sm:$0xff]
      %v407 = vld [vmem:[%s327 + $0x250] sm:$0xff]
      %v408 = vld [vmem:[%s327 + $0x258] sm:$0xff]
      %v409 = vld [vmem:[%s327 + $0x260] sm:$0xff]
      %v410 = vld [vmem:[%s327 + $0x268] sm:$0xff]
      %v411 = vld [vmem:[%s327 + $0x270] sm:$0xff]
      %v412 = vld [vmem:[%s327 + $0x278] sm:$0xff]
      %v413 = vld [vmem:[%s327 + $0x280] sm:$0xff]
      %v414 = vld [vmem:[%s327 + $0x288] sm:$0xff]
      %v415 = vld [vmem:[%s327 + $0x290] sm:$0xff]
      %v416 = vld [vmem:[%s327 + $0x298] sm:$0xff]
      %v417 = vld [vmem:[%s327 + $0x2a0] sm:$0xff]
      %v418 = vld [vmem:[%s327 + $0x2a8] sm:$0xff]
      %v419 = vld [vmem:[%s327 + $0x2b0] sm:$0xff]
      %v420 = vld [vmem:[%s327 + $0x2b8] sm:$0xff]
      %v421 = vld [vmem:[%s327 + $0x2c0] sm:$0xff]
      %v422 = vld [vmem:[%s327 + $0x2c8] sm:$0xff]
      %v423 = vld [vmem:[%s327 + $0x2d0] sm:$0xff]
      %v424 = vld [vmem:[%s327 + $0x2d8] sm:$0xff]
      %v425 = vld [vmem:[%s327 + $0x2e0] sm:$0xff]
      %v426 = vld [vmem:[%s327 + $0x2e8] sm:$0xff]
      %v427 = vld [vmem:[%s327 + $0x2f0] sm:$0xff]
      %v428 = vld [vmem:[%s327 + $0x2f8] sm:$0xff]
      %v429 = vld [vmem:[%s327 + $0x300] sm:$0xff]
      %v430 = vld [vmem:[%s327 + $0x308] sm:$0xff]
      %v431 = vld [vmem:[%s327 + $0x310] sm:$0xff]
      %v432 = vld [vmem:[%s327 + $0x318] sm:$0xff]
      %v433 = vld [vmem:[%s327 + $0x320] sm:$0xff]
      %v434 = vld [vmem:[%s327 + $0x328] sm:$0xff]
      %v435 = vld [vmem:[%s327 + $0x330] sm:$0xff]
      %v436 = vld [vmem:[%s327 + $0x338] sm:$0xff]
      %v437 = vld [vmem:[%s327 + $0x340] sm:$0xff]
      %v438 = vld [vmem:[%s327 + $0x348] sm:$0xff]
      %v439 = vld [vmem:[%s327 + $0x350] sm:$0xff]
      %v440 = vld [vmem:[%s327 + $0x358] sm:$0xff]
      %v441 = vld [vmem:[%s327 + $0x360] sm:$0xff]
      %v442 = vld [vmem:[%s327 + $0x368] sm:$0xff]
      %v443 = vld [vmem:[%s327 + $0x370] sm:$0xff]
      %v444 = vld [vmem:[%s327 + $0x378] sm:$0xff]
      %v445 = vld [vmem:[%s327 + $0x380] sm:$0xff]
      %v446 = vld [vmem:[%s327 + $0x388] sm:$0xff]
      %v447 = vld [vmem:[%s327 + $0x390] sm:$0xff]
      %v448 = vld [vmem:[%s327 + $0x398] sm:$0xff]
      %v449 = vld [vmem:[%s327 + $0x3a0] sm:$0xff]
      %v450 = vld [vmem:[%s327 + $0x3a8] sm:$0xff]
      %v451 = vld [vmem:[%s327 + $0x3b0] sm:$0xff]
      %v452 = vld [vmem:[%s327 + $0x3b8] sm:$0xff]
      %v453 = vld [vmem:[%s327 + $0x3c0] sm:$0xff]
      %v454 = vld [vmem:[%s327 + $0x3c8] sm:$0xff]
      %v455 = vld [vmem:[%s327 + $0x3d0] sm:$0xff]
      %v456 = vld [vmem:[%s327 + $0x3d8] sm:$0xff]
      %v457 = vld [vmem:[%s327 + $0x3e0] sm:$0xff]
      %v458 = vld [vmem:[%s327 + $0x3e8] sm:$0xff]
      %v459 = vld [vmem:[%s327 + $0x3f0] sm:$0xff]
      %v460 = vld [vmem:[%s327 + $0x3f8] sm:$0xff]
      %v461 = vld [vmem:[%s1] sm:$0xff]
      %v462 = vld [vmem:[%s1 + $0x8] sm:$0xff]
      %v463 = vld [vmem:[%s1 + $0x10] sm:$0xff]
      %v464 = vld [vmem:[%s1 + $0x18] sm:$0xff]
      %v465 = vld [vmem:[%s1 + $0x20] sm:$0xff]
      %v466 = vld [vmem:[%s1 + $0x28] sm:$0xff]
      %v467 = vld [vmem:[%s1 + $0x30] sm:$0xff]
      %v468 = vld [vmem:[%s1 + $0x38] sm:$0xff]
      %v469 = vld [vmem:[%s1 + $0x40] sm:$0xff]
      %v470 = vld [vmem:[%s1 + $0x48] sm:$0xff]
      %v471 = vld [vmem:[%s1 + $0x50] sm:$0xff]
      %v472 = vld [vmem:[%s1 + $0x58] sm:$0xff]
      %v473 = vld [vmem:[%s1 + $0x60] sm:$0xff]
      %v474 = vld [vmem:[%s1 + $0x68] sm:$0xff]
      %v475 = vld [vmem:[%s1 + $0x70] sm:$0xff]
      %v476 = vld [vmem:[%s1 + $0x78] sm:$0xff]
      %v477 = vld [vmem:[%s1 + $0x80] sm:$0xff]
      %v478 = vld [vmem:[%s1 + $0x88] sm:$0xff]
      %v479 = vld [vmem:[%s1 + $0x90] sm:$0xff]
      %v480 = vld [vmem:[%s1 + $0x98] sm:$0xff]
      %v481 = vld [vmem:[%s1 + $0xa0] sm:$0xff]
      %v482 = vld [vmem:[%s1 + $0xa8] sm:$0xff]
      %v483 = vld [vmem:[%s1 + $0xb0] sm:$0xff]
      %v484 = vld [vmem:[%s1 + $0xb8] sm:$0xff]
      %v485 = vld [vmem:[%s1 + $0xc0] sm:$0xff]
      %v486 = vld [vmem:[%s1 + $0xc8] sm:$0xff]
      %v487 = vld [vmem:[%s1 + $0xd0] sm:$0xff]
      %v488 = vld [vmem:[%s1 + $0xd8] sm:$0xff]
      %v489 = vld [vmem:[%s1 + $0xe0] sm:$0xff]
      %v490 = vld [vmem:[%s1 + $0xe8] sm:$0xff]
      %v491 = vld [vmem:[%s1 + $0xf0] sm:$0xff]
      %v492 = vld [vmem:[%s1 + $0xf8] sm:$0xff]
      %v493 = vld [vmem:[%s1 + $0x100] sm:$0xff]
      %v494 = vld [vmem:[%s1 + $0x108] sm:$0xff]
      %v495 = vld [vmem:[%s1 + $0x110] sm:$0xff]
      %v496 = vld [vmem:[%s1 + $0x118] sm:$0xff]
      %v497 = vld [vmem:[%s1 + $0x120] sm:$0xff]
      %v498 = vld [vmem:[%s1 + $0x128] sm:$0xff]
      %v499 = vld [vmem:[%s1 + $0x130] sm:$0xff]
      %v500 = vld [vmem:[%s1 + $0x138] sm:$0xff]
      %v501 = vld [vmem:[%s1 + $0x140] sm:$0xff]
      %v502 = vld [vmem:[%s1 + $0x148] sm:$0xff]
      %v503 = vld [vmem:[%s1 + $0x150] sm:$0xff]
      %v504 = vld [vmem:[%s1 + $0x158] sm:$0xff]
      %v505 = vld [vmem:[%s1 + $0x160] sm:$0xff]
      %v506 = vld [vmem:[%s1 + $0x168] sm:$0xff]
      %v507 = vld [vmem:[%s1 + $0x170] sm:$0xff]
      %v508 = vld [vmem:[%s1 + $0x178] sm:$0xff]
      %v509 = vld [vmem:[%s1 + $0x180] sm:$0xff]
      %v510 = vld [vmem:[%s1 + $0x188] sm:$0xff]
      %v511 = vld [vmem:[%s1 + $0x190] sm:$0xff]
      %v512 = vld [vmem:[%s1 + $0x198] sm:$0xff]
      %v513 = vld [vmem:[%s1 + $0x1a0] sm:$0xff]
      %v514 = vld [vmem:[%s1 + $0x1a8] sm:$0xff]
      %v515 = vld [vmem:[%s1 + $0x1b0] sm:$0xff]
      %v516 = vld [vmem:[%s1 + $0x1b8] sm:$0xff]
      %v517 = vld [vmem:[%s1 + $0x1c0] sm:$0xff]
      %v518 = vld [vmem:[%s1 + $0x1c8] sm:$0xff]
      %v519 = vld [vmem:[%s1 + $0x1d0] sm:$0xff]
      %v520 = vld [vmem:[%s1 + $0x1d8] sm:$0xff]
      %v521 = vld [vmem:[%s1 + $0x1e0] sm:$0xff]
      %v522 = vld [vmem:[%s1 + $0x1e8] sm:$0xff]
      %v523 = vld [vmem:[%s1 + $0x1f0] sm:$0xff]
      %v524 = vld [vmem:[%s1 + $0x1f8] sm:$0xff]
      %525 = vmatpush.msra.mxu0 %v348
      %526 = vmatpush.msra.mxu0 %v347
      %527 = vmatpush.msra.mxu0 %v346
      %528 = vmatpush.msra.mxu0 %v345
      %529 = vmatpush.msra.mxu0 %v344
      %530 = vmatpush.msra.mxu0 %v343
      %531 = vmatpush.msra.mxu0 %v342
      %532 = vmatpush.msra.mxu0 %v341
      %533 = vmatpush.msra.mxu0 %v340
      %534 = vmatpush.msra.mxu0 %v339
      %535 = vmatpush.msra.mxu0 %v338
      %536 = vmatpush.msra.mxu0 %v337
      %537 = vmatpush.msra.mxu0 %v336
      %538 = vmatpush.msra.mxu0 %v335
      %539 = vmatpush.msra.mxu0 %v334
      %540 = vmatpush.msra.mxu0 %v333
      %541 = vmatmul.f32.gmra.mxu0 %v461
      %v542 = vpop.f32.mrf.mxu0
      %v543 = vadd.f32 0.0, %v542
      %544 = vmatmul.f32.gmra.mxu0 %v469
      %v545 = vpop.f32.mrf.mxu0
      %v546 = vadd.f32 0.0, %v545
      %547 = vmatmul.f32.gmra.mxu0 %v477
      %v548 = vpop.f32.mrf.mxu0
      %v549 = vadd.f32 0.0, %v548
      %550 = vmatmul.f32.gmra.mxu0 %v485
      %v551 = vpop.f32.mrf.mxu0
      %v552 = vadd.f32 0.0, %v551
      %553 = vmatmul.f32.gmra.mxu0 %v493
      %v554 = vpop.f32.mrf.mxu0
      %v555 = vadd.f32 0.0, %v554
      %556 = vmatmul.f32.gmra.mxu0 %v501
      %v557 = vpop.f32.mrf.mxu0
      %v558 = vadd.f32 0.0, %v557
      %559 = vmatmul.f32.gmra.mxu0 %v509
      %v560 = vpop.f32.mrf.mxu0
      %v561 = vadd.f32 0.0, %v560
      %562 = vmatmul.f32.gmra.mxu0 %v517
      %v563 = vpop.f32.mrf.mxu0
      %v564 = vadd.f32 0.0, %v563
      %565 = vdwg.mxu0
      %566 = vmatpush.msra.mxu0 %v364
      %567 = vmatpush.msra.mxu0 %v363
      %568 = vmatpush.msra.mxu0 %v362
      %569 = vmatpush.msra.mxu0 %v361
      %570 = vmatpush.msra.mxu0 %v360
      %571 = vmatpush.msra.mxu0 %v359
      %572 = vmatpush.msra.mxu0 %v358
      %573 = vmatpush.msra.mxu0 %v357
      %574 = vmatpush.msra.mxu0 %v356
      %575 = vmatpush.msra.mxu0 %v355
      %576 = vmatpush.msra.mxu0 %v354
      %577 = vmatpush.msra.mxu0 %v353
      %578 = vmatpush.msra.mxu0 %v352
      %579 = vmatpush.msra.mxu0 %v351
      %580 = vmatpush.msra.mxu0 %v350
      %581 = vmatpush.msra.mxu0 %v349
      %582 = vmatmul.f32.gmra.mxu0 %v462
      %v583 = vpop.f32.mrf.mxu0
      %v584 = vadd.f32 %v543, %v583
      %585 = vmatmul.f32.gmra.mxu0 %v470
      %v586 = vpop.f32.mrf.mxu0
      %v587 = vadd.f32 %v546, %v586
      %588 = vmatmul.f32.gmra.mxu0 %v478
      %v589 = vpop.f32.mrf.mxu0
      %v590 = vadd.f32 %v549, %v589
      %591 = vmatmul.f32.gmra.mxu0 %v486
      %v592 = vpop.f32.mrf.mxu0
      %v593 = vadd.f32 %v552, %v592
      %594 = vmatmul.f32.gmra.mxu0 %v494
      %v595 = vpop.f32.mrf.mxu0
      %v596 = vadd.f32 %v555, %v595
      %597 = vmatmul.f32.gmra.mxu0 %v502
      %v598 = vpop.f32.mrf.mxu0
      %v599 = vadd.f32 %v558, %v598
      %600 = vmatmul.f32.gmra.mxu0 %v510
      %v601 = vpop.f32.mrf.mxu0
      %v602 = vadd.f32 %v561, %v601
      %603 = vmatmul.f32.gmra.mxu0 %v518
      %v604 = vpop.f32.mrf.mxu0
      %v605 = vadd.f32 %v564, %v604
      %606 = vdwg.mxu0
      %607 = vmatpush.msra.mxu0 %v380
      %608 = vmatpush.msra.mxu0 %v379
      %609 = vmatpush.msra.mxu0 %v378
      %610 = vmatpush.msra.mxu0 %v377
      %611 = vmatpush.msra.mxu0 %v376
      %612 = vmatpush.msra.mxu0 %v375
      %613 = vmatpush.msra.mxu0 %v374
      %614 = vmatpush.msra.mxu0 %v373
      %615 = vmatpush.msra.mxu0 %v372
      %616 = vmatpush.msra.mxu0 %v371
      %617 = vmatpush.msra.mxu0 %v370
      %618 = vmatpush.msra.mxu0 %v369
      %619 = vmatpush.msra.mxu0 %v368
      %620 = vmatpush.msra.mxu0 %v367
      %621 = vmatpush.msra.mxu0 %v366
      %622 = vmatpush.msra.mxu0 %v365
      %623 = vmatmul.f32.gmra.mxu0 %v463
      %v624 = vpop.f32.mrf.mxu0
      %v625 = vadd.f32 %v584, %v624
      %626 = vmatmul.f32.gmra.mxu0 %v471
      %v627 = vpop.f32.mrf.mxu0
      %v628 = vadd.f32 %v587, %v627
      %629 = vmatmul.f32.gmra.mxu0 %v479
      %v630 = vpop.f32.mrf.mxu0
      %v631 = vadd.f32 %v590, %v630
      %632 = vmatmul.f32.gmra.mxu0 %v487
      %v633 = vpop.f32.mrf.mxu0
      %v634 = vadd.f32 %v593, %v633
      %635 = vmatmul.f32.gmra.mxu0 %v495
      %v636 = vpop.f32.mrf.mxu0
      %v637 = vadd.f32 %v596, %v636
      %638 = vmatmul.f32.gmra.mxu0 %v503
      %v639 = vpop.f32.mrf.mxu0
      %v640 = vadd.f32 %v599, %v639
      %641 = vmatmul.f32.gmra.mxu0 %v511
      %v642 = vpop.f32.mrf.mxu0
      %v643 = vadd.f32 %v602, %v642
      %644 = vmatmul.f32.gmra.mxu0 %v519
      %v645 = vpop.f32.mrf.mxu0
      %v646 = vadd.f32 %v605, %v645
      %647 = vdwg.mxu0
      %648 = vmatpush.msra.mxu0 %v396
      %649 = vmatpush.msra.mxu0 %v395
      %650 = vmatpush.msra.mxu0 %v394
      %651 = vmatpush.msra.mxu0 %v393
      %652 = vmatpush.msra.mxu0 %v392
      %653 = vmatpush.msra.mxu0 %v391
      %654 = vmatpush.msra.mxu0 %v390
      %655 = vmatpush.msra.mxu0 %v389
      %656 = vmatpush.msra.mxu0 %v388
      %657 = vmatpush.msra.mxu0 %v387
      %658 = vmatpush.msra.mxu0 %v386
      %659 = vmatpush.msra.mxu0 %v385
      %660 = vmatpush.msra.mxu0 %v384
      %661 = vmatpush.msra.mxu0 %v383
      %662 = vmatpush.msra.mxu0 %v382
      %663 = vmatpush.msra.mxu0 %v381
      %664 = vmatmul.f32.gmra.mxu0 %v464
      %v665 = vpop.f32.mrf.mxu0
      %v666 = vadd.f32 %v625, %v665
      %667 = vmatmul.f32.gmra.mxu0 %v472
      %v668 = vpop.f32.mrf.mxu0
      %v669 = vadd.f32 %v628, %v668
      %670 = vmatmul.f32.gmra.mxu0 %v480
      %v671 = vpop.f32.mrf.mxu0
      %v672 = vadd.f32 %v631, %v671
      %673 = vmatmul.f32.gmra.mxu0 %v488
      %v674 = vpop.f32.mrf.mxu0
      %v675 = vadd.f32 %v634, %v674
      %676 = vmatmul.f32.gmra.mxu0 %v496
      %v677 = vpop.f32.mrf.mxu0
      %v678 = vadd.f32 %v637, %v677
      %679 = vmatmul.f32.gmra.mxu0 %v504
      %v680 = vpop.f32.mrf.mxu0
      %v681 = vadd.f32 %v640, %v680
      %682 = vmatmul.f32.gmra.mxu0 %v512
      %v683 = vpop.f32.mrf.mxu0
      %v684 = vadd.f32 %v643, %v683
      %685 = vmatmul.f32.gmra.mxu0 %v520
      %v686 = vpop.f32.mrf.mxu0
      %v687 = vadd.f32 %v646, %v686
      %688 = vdwg.mxu0
      %689 = vmatpush.msra.mxu0 %v412
      %690 = vmatpush.msra.mxu0 %v411
      %691 = vmatpush.msra.mxu0 %v410
      %692 = vmatpush.msra.mxu0 %v409
      %693 = vmatpush.msra.mxu0 %v408
      %694 = vmatpush.msra.mxu0 %v407
      %695 = vmatpush.msra.mxu0 %v406
      %696 = vmatpush.msra.mxu0 %v405
      %697 = vmatpush.msra.mxu0 %v404
      %698 = vmatpush.msra.mxu0 %v403
      %699 = vmatpush.msra.mxu0 %v402
      %700 = vmatpush.msra.mxu0 %v401
      %701 = vmatpush.msra.mxu0 %v400
      %702 = vmatpush.msra.mxu0 %v399
      %703 = vmatpush.msra.mxu0 %v398
      %704 = vmatpush.msra.mxu0 %v397
      %705 = vmatmul.f32.gmra.mxu0 %v465
      %v706 = vpop.f32.mrf.mxu0
      %v707 = vadd.f32 %v666, %v706
      %708 = vmatmul.f32.gmra.mxu0 %v473
      %v709 = vpop.f32.mrf.mxu0
      %v710 = vadd.f32 %v669, %v709
      %711 = vmatmul.f32.gmra.mxu0 %v481
      %v712 = vpop.f32.mrf.mxu0
      %v713 = vadd.f32 %v672, %v712
      %714 = vmatmul.f32.gmra.mxu0 %v489
      %v715 = vpop.f32.mrf.mxu0
      %v716 = vadd.f32 %v675, %v715
      %717 = vmatmul.f32.gmra.mxu0 %v497
      %v718 = vpop.f32.mrf.mxu0
      %v719 = vadd.f32 %v678, %v718
      %720 = vmatmul.f32.gmra.mxu0 %v505
      %v721 = vpop.f32.mrf.mxu0
      %v722 = vadd.f32 %v681, %v721
      %723 = vmatmul.f32.gmra.mxu0 %v513
      %v724 = vpop.f32.mrf.mxu0
      %v725 = vadd.f32 %v684, %v724
      %726 = vmatmul.f32.gmra.mxu0 %v521
      %v727 = vpop.f32.mrf.mxu0
      %v728 = vadd.f32 %v687, %v727
      %729 = vdwg.mxu0
      %730 = vmatpush.msra.mxu0 %v428
      %731 = vmatpush.msra.mxu0 %v427
      %732 = vmatpush.msra.mxu0 %v426
      %733 = vmatpush.msra.mxu0 %v425
      %734 = vmatpush.msra.mxu0 %v424
      %735 = vmatpush.msra.mxu0 %v423
      %736 = vmatpush.msra.mxu0 %v422
      %737 = vmatpush.msra.mxu0 %v421
      %738 = vmatpush.msra.mxu0 %v420
      %739 = vmatpush.msra.mxu0 %v419
      %740 = vmatpush.msra.mxu0 %v418
      %741 = vmatpush.msra.mxu0 %v417
      %742 = vmatpush.msra.mxu0 %v416
      %743 = vmatpush.msra.mxu0 %v415
      %744 = vmatpush.msra.mxu0 %v414
      %745 = vmatpush.msra.mxu0 %v413
      %746 = vmatmul.f32.gmra.mxu0 %v466
      %v747 = vpop.f32.mrf.mxu0
      %v748 = vadd.f32 %v707, %v747
      %749 = vmatmul.f32.gmra.mxu0 %v474
      %v750 = vpop.f32.mrf.mxu0
      %v751 = vadd.f32 %v710, %v750
      %752 = vmatmul.f32.gmra.mxu0 %v482
      %v753 = vpop.f32.mrf.mxu0
      %v754 = vadd.f32 %v713, %v753
      %755 = vmatmul.f32.gmra.mxu0 %v490
      %v756 = vpop.f32.mrf.mxu0
      %v757 = vadd.f32 %v716, %v756
      %758 = vmatmul.f32.gmra.mxu0 %v498
      %v759 = vpop.f32.mrf.mxu0
      %v760 = vadd.f32 %v719, %v759
      %761 = vmatmul.f32.gmra.mxu0 %v506
      %v762 = vpop.f32.mrf.mxu0
      %v763 = vadd.f32 %v722, %v762
      %764 = vmatmul.f32.gmra.mxu0 %v514
      %v765 = vpop.f32.mrf.mxu0
      %v766 = vadd.f32 %v725, %v765
      %767 = vmatmul.f32.gmra.mxu0 %v522
      %v768 = vpop.f32.mrf.mxu0
      %v769 = vadd.f32 %v728, %v768
      %770 = vdwg.mxu0
      %771 = vmatpush.msra.mxu0 %v444
      %772 = vmatpush.msra.mxu0 %v443
      %773 = vmatpush.msra.mxu0 %v442
      %774 = vmatpush.msra.mxu0 %v441
      %775 = vmatpush.msra.mxu0 %v440
      %776 = vmatpush.msra.mxu0 %v439
      %777 = vmatpush.msra.mxu0 %v438
      %778 = vmatpush.msra.mxu0 %v437
      %779 = vmatpush.msra.mxu0 %v436
      %780 = vmatpush.msra.mxu0 %v435
      %781 = vmatpush.msra.mxu0 %v434
      %782 = vmatpush.msra.mxu0 %v433
      %783 = vmatpush.msra.mxu0 %v432
      %784 = vmatpush.msra.mxu0 %v431
      %785 = vmatpush.msra.mxu0 %v430
      %786 = vmatpush.msra.mxu0 %v429
      %787 = vmatmul.f32.gmra.mxu0 %v467
      %v788 = vpop.f32.mrf.mxu0
      %v789 = vadd.f32 %v748, %v788
      %790 = vmatmul.f32.gmra.mxu0 %v475
      %v791 = vpop.f32.mrf.mxu0
      %v792 = vadd.f32 %v751, %v791
      %793 = vmatmul.f32.gmra.mxu0 %v483
      %v794 = vpop.f32.mrf.mxu0
      %v795 = vadd.f32 %v754, %v794
      %796 = vmatmul.f32.gmra.mxu0 %v491
      %v797 = vpop.f32.mrf.mxu0
      %v798 = vadd.f32 %v757, %v797
      %799 = vmatmul.f32.gmra.mxu0 %v499
      %v800 = vpop.f32.mrf.mxu0
      %v801 = vadd.f32 %v760, %v800
      %802 = vmatmul.f32.gmra.mxu0 %v507
      %v803 = vpop.f32.mrf.mxu0
      %v804 = vadd.f32 %v763, %v803
      %805 = vmatmul.f32.gmra.mxu0 %v515
      %v806 = vpop.f32.mrf.mxu0
      %v807 = vadd.f32 %v766, %v806
      %808 = vmatmul.f32.gmra.mxu0 %v523
      %v809 = vpop.f32.mrf.mxu0
      %v810 = vadd.f32 %v769, %v809
      %811 = vdwg.mxu0
      %812 = vmatpush.msra.mxu0 %v460
      %813 = vmatpush.msra.mxu0 %v459
      %814 = vmatpush.msra.mxu0 %v458
      %815 = vmatpush.msra.mxu0 %v457
      %816 = vmatpush.msra.mxu0 %v456
      %817 = vmatpush.msra.mxu0 %v455
      %818 = vmatpush.msra.mxu0 %v454
      %819 = vmatpush.msra.mxu0 %v453
      %820 = vmatpush.msra.mxu0 %v452
      %821 = vmatpush.msra.mxu0 %v451
      %822 = vmatpush.msra.mxu0 %v450
      %823 = vmatpush.msra.mxu0 %v449
      %824 = vmatpush.msra.mxu0 %v448
      %825 = vmatpush.msra.mxu0 %v447
      %826 = vmatpush.msra.mxu0 %v446
      %827 = vmatpush.msra.mxu0 %v445
      %828 = vmatmul.f32.gmra.mxu0 %v468
      %v829 = vpop.f32.mrf.mxu0
      %v830 = vadd.f32 %v789, %v829
      %831 = vmatmul.f32.gmra.mxu0 %v476
      %v832 = vpop.f32.mrf.mxu0
      %v833 = vadd.f32 %v792, %v832
      %834 = vmatmul.f32.gmra.mxu0 %v484
      %v835 = vpop.f32.mrf.mxu0
      %v836 = vadd.f32 %v795, %v835
      %837 = vmatmul.f32.gmra.mxu0 %v492
      %v838 = vpop.f32.mrf.mxu0
      %v839 = vadd.f32 %v798, %v838
      %840 = vmatmul.f32.gmra.mxu0 %v500
      %v841 = vpop.f32.mrf.mxu0
      %v842 = vadd.f32 %v801, %v841
      %843 = vmatmul.f32.gmra.mxu0 %v508
      %v844 = vpop.f32.mrf.mxu0
      %v845 = vadd.f32 %v804, %v844
      %846 = vmatmul.f32.gmra.mxu0 %v516
      %v847 = vpop.f32.mrf.mxu0
      %v848 = vadd.f32 %v807, %v847
      %849 = vmatmul.f32.gmra.mxu0 %v524
      %v850 = vpop.f32.mrf.mxu0
      %v851 = vadd.f32 %v810, %v850
      %852 = vdwg.mxu0
      %v853 = vld [vmem:[%s2] sm:$0xf]
      %v854 = vld [vmem:[%s3] sm:$0x1]
      %v856 = vperm.slane %v854, 0
      %vm858 = vcmask 31744
      %v860 = vsel %vm858, %v830, 0
      %v863 = vsel %vm858, %v833, 0
      %v866 = vsel %vm858, %v836, 0
      %v869 = vsel %vm858, %v839, 0
      %v872 = vsel %vm858, %v842, 0
      %v875 = vsel %vm858, %v845, 0
      %v878 = vsel %vm858, %v848, 0
      %v881 = vsel %vm858, %v851, 0
      %vm883 = vcmask 1043456
      %v885 = vsel %vm883, %v853, 0
      %887 = vmatpush.msra.mxu0 0.0
      %888 = vmatpush.msra.mxu0 0.0
      %889 = vmatpush.msra.mxu0 0.0
      %890 = vmatpush.msra.mxu0 0.0
      %891 = vmatpush.msra.mxu0 0.0
      %892 = vmatpush.msra.mxu0 0.0
      %893 = vmatpush.msra.mxu0 0.0
      %894 = vmatpush.msra.mxu0 0.0
      %895 = vmatpush.msra.mxu0 0.0
      %896 = vmatpush.msra.mxu0 0.0
      %897 = vmatpush.msra.mxu0 0.0
      %898 = vmatpush.msra.mxu0 0.0
      %899 = vmatpush.msra.mxu0 0.0
      %900 = vmatpush.msra.mxu0 0.0
      %901 = vmatpush.msra.mxu0 0.0
      %902 = vmatpush.msra.mxu0 %v885
      %903 = vmatmul.f32.gmra.mxu0 %v860
      %v904 = vpop.f32.mrf.mxu0
      %v905 = vadd.f32 %v856, %v904
      %906 = vmatmul.f32.gmra.mxu0 %v863
      %v907 = vpop.f32.mrf.mxu0
      %v908 = vadd.f32 %v856, %v907
      %909 = vmatmul.f32.gmra.mxu0 %v866
      %v910 = vpop.f32.mrf.mxu0
      %v911 = vadd.f32 %v856, %v910
      %912 = vmatmul.f32.gmra.mxu0 %v869
      %v913 = vpop.f32.mrf.mxu0
      %v914 = vadd.f32 %v856, %v913
      %915 = vmatmul.f32.gmra.mxu0 %v872
      %v916 = vpop.f32.mrf.mxu0
      %v917 = vadd.f32 %v856, %v916
      %918 = vmatmul.f32.gmra.mxu0 %v875
      %v919 = vpop.f32.mrf.mxu0
      %v920 = vadd.f32 %v856, %v919
      %921 = vmatmul.f32.gmra.mxu0 %v878
      %v922 = vpop.f32.mrf.mxu0
      %v923 = vadd.f32 %v856, %v922
      %924 = vmatmul.f32.gmra.mxu0 %v881
      %v925 = vpop.f32.mrf.mxu0
      %v926 = vadd.f32 %v856, %v925
      %927 = vdwg.mxu0
      %v928 = vmax.f32 %v905, 0.0
      %v929 = vmax.f32 %v908, 0.0
      %v930 = vmax.f32 %v911, 0.0
      %v931 = vmax.f32 %v914, 0.0
      %v932 = vmax.f32 %v917, 0.0
      %v933 = vmax.f32 %v920, 0.0
      %v934 = vmax.f32 %v923, 0.0
      %v935 = vmax.f32 %v926, 0.0
      %v936 = vld [vmem:[%s4] sm:$0xff]
      %v937 = vld [vmem:[%s4 + $0x8] sm:$0xff]
      %v938 = vld [vmem:[%s4 + $0x10] sm:$0xff]
      %v939 = vld [vmem:[%s4 + $0x18] sm:$0xff]
      %v940 = vld [vmem:[%s4 + $0x20] sm:$0xff]
      %v941 = vld [vmem:[%s4 + $0x28] sm:$0xff]
      %v942 = vld [vmem:[%s4 + $0x30] sm:$0xff]
      %v943 = vld [vmem:[%s4 + $0x38] sm:$0xff]
      %vm944 = vcmask 523264
      %v946 = vsel %vm944, %v936, 0
      %v949 = vsel %vm944, %v937, 0
      %v952 = vsel %vm944, %v938, 0
      %v955 = vsel %vm944, %v939, 0
      %v958 = vsel %vm944, %v940, 0
      %v961 = vsel %vm944, %v941, 0
      %v964 = vsel %vm944, %v942, 0
      %v967 = vsel %vm944, %v943, 0
      %969 = vmatpush.msra.mxu0 0.0
      %970 = vmatpush.msra.mxu0 0.0
      %971 = vmatpush.msra.mxu0 0.0
      %972 = vmatpush.msra.mxu0 0.0
      %973 = vmatpush.msra.mxu0 0.0
      %974 = vmatpush.msra.mxu0 0.0
      %975 = vmatpush.msra.mxu0 0.0
      %976 = vmatpush.msra.mxu0 0.0
      %977 = vmatpush.msra.mxu0 %v935
      %978 = vmatpush.msra.mxu0 %v934
      %979 = vmatpush.msra.mxu0 %v933
      %980 = vmatpush.msra.mxu0 %v932
      %981 = vmatpush.msra.mxu0 %v931
      %982 = vmatpush.msra.mxu0 %v930
      %983 = vmatpush.msra.mxu0 %v929
      %984 = vmatpush.msra.mxu0 %v928
      %985 = vmatmul.f32.gmra.mxu0 %v946
      %v986 = vpop.f32.mrf.mxu0
      %v987 = vadd.f32 0.0, %v986
      %988 = vmatmul.f32.gmra.mxu0 %v949
      %v989 = vpop.f32.mrf.mxu0
      %v990 = vadd.f32 0.0, %v989
      %991 = vmatmul.f32.gmra.mxu0 %v952
      %v992 = vpop.f32.mrf.mxu0
      %v993 = vadd.f32 0.0, %v992
      %994 = vmatmul.f32.gmra.mxu0 %v955
      %v995 = vpop.f32.mrf.mxu0
      %v996 = vadd.f32 0.0, %v995
      %997 = vmatmul.f32.gmra.mxu0 %v958
      %v998 = vpop.f32.mrf.mxu0
      %v999 = vadd.f32 0.0, %v998
      %1000 = vmatmul.f32.gmra.mxu0 %v961
      %v1001 = vpop.f32.mrf.mxu0
      %v1002 = vadd.f32 0.0, %v1001
      %1003 = vmatmul.f32.gmra.mxu0 %v964
      %v1004 = vpop.f32.mrf.mxu0
      %v1005 = vadd.f32 0.0, %v1004
      %1006 = vmatmul.f32.gmra.mxu0 %v967
      %v1007 = vpop.f32.mrf.mxu0
      %v1008 = vadd.f32 0.0, %v1007
      %1009 = vdwg.mxu0
      %v1010 = vld [vmem:[%s5] sm:$0xff]
      %v1011 = vld [vmem:[%s5 + $0x8] sm:$0xff]
      %v1013 = vsel %vm944, %v1010, 0
      %v1016 = vsel %vm944, %v1011, 0
      %1018 = vmatpush.msra.mxu0 0.0
      %1019 = vmatpush.msra.mxu0 0.0
      %1020 = vmatpush.msra.mxu0 0.0
      %1021 = vmatpush.msra.mxu0 0.0
      %1022 = vmatpush.msra.mxu0 0.0
      %1023 = vmatpush.msra.mxu0 0.0
      %1024 = vmatpush.msra.mxu0 0.0
      %1025 = vmatpush.msra.mxu0 0.0
      %1026 = vmatpush.msra.mxu0 %v935
      %1027 = vmatpush.msra.mxu0 %v934
      %1028 = vmatpush.msra.mxu0 %v933
      %1029 = vmatpush.msra.mxu0 %v932
      %1030 = vmatpush.msra.mxu0 %v931
      %1031 = vmatpush.msra.mxu0 %v930
      %1032 = vmatpush.msra.mxu0 %v929
      %1033 = vmatpush.msra.mxu0 %v928
      %1034 = vmatmul.f32.gmra.mxu0 %v1013
      %v1035 = vpop.f32.mrf.mxu0
      %v1036 = vadd.f32 0.0, %v1035
      %1037 = vmatmul.f32.gmra.mxu0 %v1016
      %v1038 = vpop.f32.mrf.mxu0
      %v1039 = vadd.f32 0.0, %v1038
      %1040 = vdwg.mxu0
      %v1041 = vld [vmem:[%s6] sm:$0xff]
      %v1042 = vld [vmem:[%s6 + $0x8] sm:$0xff]
      %v1043 = vld [vmem:[%s6 + $0x10] sm:$0xff]
      %v1044 = vld [vmem:[%s6 + $0x18] sm:$0xff]
      %v1045 = vld [vmem:[%s6 + $0x20] sm:$0xff]
      %v1046 = vld [vmem:[%s6 + $0x28] sm:$0xff]
      %v1047 = vld [vmem:[%s6 + $0x30] sm:$0xff]
      %v1048 = vld [vmem:[%s6 + $0x38] sm:$0xff]
      %v1049 = vld [vmem:[%s7] sm:$0x1]
      %v1051 = vperm.slane %v1049, 0
      %v1054 = vsel %vm944, %v1036, 0
      %v1057 = vsel %vm944, %v1039, 0
      %1059 = vmatpush.msra.mxu0 0.0
      %1060 = vmatpush.msra.mxu0 0.0
      %1061 = vmatpush.msra.mxu0 0.0
      %1062 = vmatpush.msra.mxu0 0.0
      %1063 = vmatpush.msra.mxu0 0.0
      %1064 = vmatpush.msra.mxu0 0.0
      %1065 = vmatpush.msra.mxu0 0.0
      %1066 = vmatpush.msra.mxu0 0.0
      %1067 = vmatpush.msra.mxu0 %v1048
      %1068 = vmatpush.msra.mxu0 %v1047
      %1069 = vmatpush.msra.mxu0 %v1046
      %1070 = vmatpush.msra.mxu0 %v1045
      %1071 = vmatpush.msra.mxu0 %v1044
      %1072 = vmatpush.msra.mxu0 %v1043
      %1073 = vmatpush.msra.mxu0 %v1042
      %1074 = vmatpush.msra.mxu0 %v1041
      %1075 = vmatmul.f32.gmra.mxu0 %v1054
      %v1076 = vpop.f32.mrf.mxu0
      %v1077 = vadd.f32 %v1051, %v1076
      %1078 = vmatmul.f32.gmra.mxu0 %v1057
      %v1079 = vpop.f32.mrf.mxu0
      %v1080 = vadd.f32 %v1051, %v1079
      %1081 = vdwg.mxu0
      %v1082 = vmax.f32 %v1077, 0.0
      %v1083 = vmax.f32 %v1080, 0.0
      %v1084 = vld [vmem:[%s8] sm:$0xff]
      %v1085 = vld [vmem:[%s8 + $0x8] sm:$0xff]
      %v1086 = vld [vmem:[%s8 + $0x10] sm:$0xff]
      %v1087 = vld [vmem:[%s8 + $0x18] sm:$0xff]
      %v1088 = vld [vmem:[%s8 + $0x20] sm:$0xff]
      %v1089 = vld [vmem:[%s8 + $0x28] sm:$0xff]
      %v1090 = vld [vmem:[%s8 + $0x30] sm:$0xff]
      %v1091 = vld [vmem:[%s8 + $0x38] sm:$0xff]
      %vm1092 = vcmask 130048
      %v1094 = vsel %vm1092, %v1084, 0
      %v1097 = vsel %vm1092, %v1085, 0
      %v1100 = vsel %vm1092, %v1086, 0
      %v1103 = vsel %vm1092, %v1087, 0
      %v1106 = vsel %vm1092, %v1088, 0
      %v1109 = vsel %vm1092, %v1089, 0
      %v1112 = vsel %vm1092, %v1090, 0
      %v1115 = vsel %vm1092, %v1091, 0
      %1117 = vmatpush.msra.mxu0 0.0
      %1118 = vmatpush.msra.mxu0 0.0
      %1119 = vmatpush.msra.mxu0 0.0
      %1120 = vmatpush.msra.mxu0 0.0
      %1121 = vmatpush.msra.mxu0 0.0
      %1122 = vmatpush.msra.mxu0 0.0
      %1123 = vmatpush.msra.mxu0 0.0
      %1124 = vmatpush.msra.mxu0 0.0
      %1125 = vmatpush.msra.mxu0 0.0
      %1126 = vmatpush.msra.mxu0 0.0
      %1127 = vmatpush.msra.mxu0 0.0
      %1128 = vmatpush.msra.mxu0 0.0
      %1129 = vmatpush.msra.mxu0 0.0
      %1130 = vmatpush.msra.mxu0 0.0
      %1131 = vmatpush.msra.mxu0 %v1083
      %1132 = vmatpush.msra.mxu0 %v1082
      %1133 = vmatmul.f32.gmra.mxu0 %v1094
      %v1134 = vpop.f32.mrf.mxu0
      %v1135 = vadd.f32 0.0, %v1134
      %1136 = vmatmul.f32.gmra.mxu0 %v1097
      %v1137 = vpop.f32.mrf.mxu0
      %v1138 = vadd.f32 0.0, %v1137
      %1139 = vmatmul.f32.gmra.mxu0 %v1100
      %v1140 = vpop.f32.mrf.mxu0
      %v1141 = vadd.f32 0.0, %v1140
      %1142 = vmatmul.f32.gmra.mxu0 %v1103
      %v1143 = vpop.f32.mrf.mxu0
      %v1144 = vadd.f32 0.0, %v1143
      %1145 = vmatmul.f32.gmra.mxu0 %v1106
      %v1146 = vpop.f32.mrf.mxu0
      %v1147 = vadd.f32 0.0, %v1146
      %1148 = vmatmul.f32.gmra.mxu0 %v1109
      %v1149 = vpop.f32.mrf.mxu0
      %v1150 = vadd.f32 0.0, %v1149
      %1151 = vmatmul.f32.gmra.mxu0 %v1112
      %v1152 = vpop.f32.mrf.mxu0
      %v1153 = vadd.f32 0.0, %v1152
      %1154 = vmatmul.f32.gmra.mxu0 %v1115
      %v1155 = vpop.f32.mrf.mxu0
      %v1156 = vadd.f32 0.0, %v1155
      %1157 = vdwg.mxu0
      %1166 = vrot.lane.b32.xlu0 %v1135, 64
      %v1167 = vpop.permute.xlu0 %1166
      %1168 = vrot.lane.b32.xlu0 %v1138, 64
      %v1169 = vpop.permute.xlu0 %1168
      %1170 = vrot.lane.b32.xlu0 %v1141, 64
      %v1171 = vpop.permute.xlu0 %1170
      %1172 = vrot.lane.b32.xlu0 %v1144, 64
      %v1173 = vpop.permute.xlu0 %1172
      %1174 = vrot.lane.b32.xlu0 %v1147, 64
      %v1175 = vpop.permute.xlu0 %1174
      %1176 = vrot.lane.b32.xlu0 %v1150, 64
      %v1177 = vpop.permute.xlu0 %1176
      %1178 = vrot.lane.b32.xlu0 %v1153, 64
      %v1179 = vpop.permute.xlu0 %1178
      %1180 = vrot.lane.b32.xlu0 %v1156, 64
      %v1181 = vpop.permute.xlu0 %1180
      %v1190 = vsel %vm944, %v987, %v1167
      %v1191 = vsel %vm944, %v990, %v1169
      %v1192 = vsel %vm944, %v993, %v1171
      %v1193 = vsel %vm944, %v996, %v1173
      %v1194 = vsel %vm944, %v999, %v1175
      %v1195 = vsel %vm944, %v1002, %v1177
      %v1196 = vsel %vm944, %v1005, %v1179
      %v1197 = vsel %vm944, %v1008, %v1181
      %1198 = vst [vmem:[%s332] sm:$0xff] %v1190
      %1199 = vst [vmem:[%s332 + $0x8] sm:$0xff] %v1191
      %1200 = vst [vmem:[%s332 + $0x10] sm:$0xff] %v1192
      %1201 = vst [vmem:[%s332 + $0x18] sm:$0xff] %v1193
      %1202 = vst [vmem:[%s332 + $0x20] sm:$0xff] %v1194
      %1203 = vst [vmem:[%s332 + $0x28] sm:$0xff] %v1195
      %1204 = vst [vmem:[%s332 + $0x30] sm:$0xff] %v1196
      %1205 = vst [vmem:[%s332 + $0x38] sm:$0xff] %v1197
      %p1206 = scmp.lt.s32.totalorder %s20, 1
      %s1207 = scalar_select %p1206, %s20, 1
      %s1208 = smul.addr %s1207, 8
      %s1209 = smul.addr %s1208, 8
      %s1210 = scalar_lea.vmem %s9, %s1209
      // Predicated region
      $region57: #{patchcore_forward.3} parent=55 // pred_check
        %p1211 = pneg %p232
      $region58: #{patchcore_forward.3} parent=55 // pred_check_branch
        %1213 = sbr.rel (%p1211) target = $region60
      $region59: #{patchcore_forward.3} parent=55 // pred_region
        _
      $region60: #{patchcore_forward.3} parent=55 // pred_fallthru
        _
    $region56: #{patchcore_forward.3} parent=5 // pred_fallthru
      _
    %p1214 = scmp.le.s32.totalorder 2, %s15
    // Predicated region
    $region61: #{patchcore_forward.3} parent=5 // pred_check
      %p1215 = pneg %p1214
    $region62: #{patchcore_forward.3} parent=5 // pred_check_branch
      %1217 = sbr.rel (%p1215) target = $region64
    $region63: #{patchcore_forward.3} parent=5 // pred_region
      %s1218 = ssub.s32 %s15, 2
      // Predicated region
      $region65: #{patchcore_forward.3} parent=63 // pred_check
        %p1219 = pneg %p238
      $region66: #{patchcore_forward.3} parent=63 // pred_check_branch
        %1221 = sbr.rel (%p1219) target = $region68
      $region67: #{patchcore_forward.3} parent=63 // pred_region
        %p1222 = scmp.lt.s32.totalorder %s21, 1
        %s1223 = scalar_select %p1222, %s21, 1
        %s1224 = smul.addr %s1223, 8
        %s1225 = smul.addr %s1224, 8
        %s1226 = scalar_lea.vmem %s9, %s1225
      $region68: #{patchcore_forward.3} parent=63 // pred_fallthru
        _
    $region64: #{patchcore_forward.3} parent=5 // pred_fallthru
      _
  $region6: #{patchcore_forward.3} parent=0 // loop_footer
    %s19 = sadd.s32 1, %s15
  $region7: #{patchcore_forward.3} parent=0 // loop_footer_branch
    %14 = sbr.rel target = $region3
  $region8: #{patchcore_forward.3} parent=0 // loop_exit
    _

</llo_original>
